<compile_context>
chip_gen: v7x
topology: tpu7x:2x2x1
jax: 0.10.0
libtpu: 0.0.40
codegen_flags: <defaults>
</compile_context>

<pallas_src>
import math
import numpy as np
import jax
import jax.numpy as jnp
from jax.experimental import pallas as pl
from jax.experimental.pallas import tpu as pltpu

# ---------------- model configuration (small synthetic sizes) ----------------
B = 2            # batch
N_V = 8          # number of views
N_C = 16         # number of detector channels
HEIGHT = 8
WIDTH = 8
HW = HEIGHT * WIDTH
D_ANG = math.pi / N_V    # angular increment (radians), as passed to iCTNet.__init__
BETA = 5
ALPHA_1 = 1
ALPHA_2 = 1
NVA1 = N_V * ALPHA_1
NVA2 = N_V * ALPHA_2
C1 = 64          # L1/L2 channel width (fixed by the module definition)
C7 = 16          # L7 channel width
R = N_V * N_C                        # flattened (view, detector) row width = 128
HWP = ((HW + 127) // 128) * 128      # image row padded to a full 128-lane slab

# The fused kernel keeps every intermediate at row width R (and shares one set
# of detector-boundary masks); that requires alpha_1 == alpha_2 == 1.
assert NVA1 * N_C == R and NVA2 * N_C == R

# Row layout of the packed MXW constant (all offsets 8-sublane aligned):
_W2S_ROWS = 3 * C1        # rows   0..191 : L2 taps-on-M weights
_W3B_ROW = _W2S_ROWS      # rows 192..194 : L3 weights for the x1 block
_W3C_ROW = 200            # rows 200..202 : L3 weights for the x2 block
_W8S_ROW = 208            # rows 208..212 : L8 taps-on-M weights (cols 0..15)
_MXW_ROWS = 216


# ================================ the kernel =================================

def _make_kernel(rows):
    """Fused iCTNet forward for `rows` sinogram rows folded into one grid step."""
    W = rows * R                      # lane width of the detector-conv stages

    def kernel(x_ref, big_ref, cmat_ref, mxw_ref, small_ref, brow_ref, o_ref):
        def mm(a, b):
            return jnp.dot(a, b, preferred_element_type=jnp.float32)

        def hs(v, lam):               # Hardshrink
            return jnp.where(jnp.abs(v) > lam, v, 0.0)

        # Detector-boundary masks generated in-kernel (VPU iota + compare).
        # The detector index is periodic in N_C along the lane axis, so the
        # same masks zero wrap-around lanes at detector, view, batch and
        # global-roll boundaries alike.
        det = jax.lax.broadcasted_iota(jnp.int32, (1, W), 1) % N_C
        okp1 = det >= 1
        okp2 = det >= 2
        okn1 = det <= N_C - 2
        okn2 = det <= N_C - 3

        # Zero-padded shifts along the detector axis: XLU lane rotation + mask.
        def prev1(a): return jnp.where(okp1, pltpu.roll(a, 1, axis=1), 0.0)
        def prev2(a): return jnp.where(okp2, pltpu.roll(a, 2, axis=1), 0.0)
        def next1(a): return jnp.where(okn1, pltpu.roll(a, W - 1, axis=1), 0.0)
        def next2(a): return jnp.where(okn2, pltpu.roll(a, W - 2, axis=1), 0.0)

        # Layout shuffles between the two activation layouts (128-lane-aligned
        # slices + concat; `rows` is tiny so this is a small vreg shuffle).
        def to_rows(a):    # (1, rows*R) -> (rows, R)   batch on sublanes
            if rows == 1:
                return a
            return jnp.concatenate(
                [a[:, i * R:(i + 1) * R] for i in range(rows)], axis=0)

        def to_lanes(a):   # (rows, R) -> (1, rows*R)   batch on lanes
            if rows == 1:
                return a
            return jnp.concatenate([a[i:i + 1, :] for i in range(rows)], axis=1)

        # ---- unpack the packed small-constant slab (static sub-tile slices) --
        small = small_ref[...]                        # (64, 16)
        w1 = small[:, 0:3]                            # (64, 3)  L1 taps
        b1 = small[:, 3:4]                            # (64, 1)
        b2 = small[:, 4:5]                            # (64, 1)
        w7 = small[0:C7, 5:10]                        # (16, 5)  L7 taps
        b7 = small[0:C7, 10:11]                       # (16, 1)
        w3x = small[0:3, 11:12]                       # (3, 1)   L3 taps for x
        b3 = small[0:1, 12:13]                        # (1, 1)
        b8 = small[1:2, 12:13]                        # (1, 1)

        mxw = mxw_ref[...]                            # (216, 64)
        brows = brow_ref[...]                         # (3, R)
        b4 = brows[0:1]
        b5 = brows[1:2]
        b9 = brows[2:3]

        x = x_ref[0]                                  # (1, W), detector fastest

        # ---- L1: Conv2d(1,64,(1,3),pad(0,1)) + Hardshrink(1e-5) --------------
        # in_channels == 1, so per-tap VPU broadcast-MACs (no concat, no MXU).
        x1 = hs(w1[:, 0:1] * prev1(x) + w1[:, 1:2] * x + w1[:, 2:3] * next1(x)
                + b1, 1e-5)                           # (64, W)

        # ---- L2 (+ the x1 block of L3): single MXU matmul, taps on M ---------
        p = mm(mxw, x1)                               # (216, W)
        x2 = hs(prev1(p[0:C1]) + p[C1:2 * C1] + next1(p[2 * C1:3 * C1])
                + b2, 1e-5)                           # (64, W)

        # ---- L3: Conv2d(129,1,(1,3)) on cat([x, x1, x2]) + Hardshrink --------
        q3 = (w3x * x + p[_W3B_ROW:_W3B_ROW + 3]
              + mm(mxw[_W3C_ROW:_W3C_ROW + 3, :], x2))            # (3, W)
        x3 = hs(prev1(q3[0:1]) + q3[1:2] + next1(q3[2:3]) + b3, 1e-5)  # (1, W)

        # ---- L4 / L5: 1x1 view mixing == kron(W, I_Nc); batch on sublanes ----
        xr = to_rows(x3)                              # (rows, R)
        x4 = hs(mm(xr, big_ref[0]) + b4, 1e-8)
        x5 = hs(mm(x4, big_ref[1]) + b5, 1e-8)

        # ---- L6: full-plane circular conv == dense circulant (no bias) -------
        x6 = mm(x5, big_ref[2])                       # (rows, R)

        # ---- L7: Conv2d(1,16,(1,5),pad(0,2)) + Tanh (broadcast-MAC) ----------
        x6l = to_lanes(x6)                            # (1, W)
        x7 = jnp.tanh(w7[:, 0:1] * prev2(x6l) + w7[:, 1:2] * prev1(x6l)
                      + w7[:, 2:3] * x6l + w7[:, 3:4] * next1(x6l)
                      + w7[:, 4:5] * next2(x6l) + b7)             # (16, W)

        # ---- L8: Conv2d(16,1,(1,5),pad(0,2)) + Tanh, taps on M ---------------
        p8 = mm(mxw[_W8S_ROW:_W8S_ROW + BETA, 0:C7], x7)          # (5, W)
        x8 = jnp.tanh(prev2(p8[0:1]) + prev1(p8[1:2]) + p8[2:3]
                      + next1(p8[3:4]) + next2(p8[4:5]) + b8)     # (1, W)

        # ---- L9: 1x1 over detector channels == kron(I, W9) + Tanh ------------
        x9 = jnp.tanh(mm(to_rows(x8), big_ref[3]) + b9)           # (rows, R)

        # ---- L10 + L11 (bilinear rotation) + L12 folded into one matrix ------
        o_ref[0] = mm(x9, cmat_ref[...])              # (rows, HWP) lane-dense

    return kernel


# ============================ pallas_call wrapper ============================

def _num_tensorcores():
    # v7x exposes 2 TensorCores behind one device (megacore); v5e/v6e have 1.
    try:
        kind = jax.devices()[0].device_kind.lower()
    except Exception:
        return 1
    return 2 if ("v7" in kind or "7x" in kind) else 1


def ictnet_forward(x, q, rows_per_step=None):
    """x: (B, 1, N_V, N_C) sinogram batch -> (B, 1, HEIGHT, WIDTH)."""
    if rows_per_step is None:
        nc = _num_tensorcores()
        # Single-TC chips (v5e/v6e): fold the whole batch into one grid step.
        # v7x: one batch row per "parallel" grid step (one per TensorCore).
        rows_per_step = B // nc if (nc > 1 and B % nc == 0) else B
    steps = B // rows_per_step
    w = rows_per_step * R

    xrow = x.astype(jnp.float32).reshape(steps, 1, w)   # lane-stacked rows
    consts = (q["BIG"], q["CMAT"], q["MXW"], q["SMALL"], q["BROWS"])

    in_specs = [pl.BlockSpec((1, 1, w), lambda s: (s, 0, 0))]
    in_specs += [pl.BlockSpec(c.shape, lambda s, _n=c.ndim: (0,) * _n)
                 for c in consts]

    out = pl.pallas_call(
        _make_kernel(rows_per_step),
        grid=(steps,),
        in_specs=in_specs,
        out_specs=pl.BlockSpec((1, rows_per_step, HWP), lambda s: (s, 0, 0)),
        out_shape=jax.ShapeDtypeStruct((steps, rows_per_step, HWP), jnp.float32),
        compiler_params=pltpu.CompilerParams(
            dimension_semantics=("parallel",)),
    )(xrow, *consts)
    # Drop the image-row lane padding and restore NCHW.
    return out.reshape(B, HWP)[:, :HW].reshape(B, 1, HEIGHT, WIDTH)


# ======================= parameter init & weight prep ========================

def _xavier_uniform(key, shape):
    fan_in = shape[1] * shape[2] * shape[3]
    fan_out = shape[0] * shape[2] * shape[3]
    bound = math.sqrt(6.0 / (fan_in + fan_out))
    return jax.random.uniform(key, shape, jnp.float32, -bound, bound)


def init_params(key):
    ks = jax.random.split(key, 11)
    p = {}
    p["W1"] = _xavier_uniform(ks[0], (C1, 1, 1, 3));         p["b1"] = jnp.zeros((C1,), jnp.float32)
    p["W2"] = _xavier_uniform(ks[1], (C1, C1, 1, 3));        p["b2"] = jnp.zeros((C1,), jnp.float32)
    p["W3"] = _xavier_uniform(ks[2], (1, 2 * C1 + 1, 1, 3)); p["b3"] = jnp.zeros((1,), jnp.float32)
    p["W4"] = _xavier_uniform(ks[3], (NVA1, N_V, 1, 1));     p["b4"] = jnp.zeros((NVA1,), jnp.float32)
    p["W5"] = _xavier_uniform(ks[4], (NVA2, NVA1, 1, 1));    p["b5"] = jnp.zeros((NVA2,), jnp.float32)
    p["W6"] = _xavier_uniform(ks[5], (1, 1, NVA2, N_C))                     # no bias
    p["W7"] = _xavier_uniform(ks[6], (C7, 1, 1, BETA));      p["b7"] = jnp.zeros((C7,), jnp.float32)
    p["W8"] = _xavier_uniform(ks[7], (1, C7, 1, BETA));      p["b8"] = jnp.zeros((1,), jnp.float32)
    p["W9"] = _xavier_uniform(ks[8], (N_C, N_C, 1, 1));      p["b9"] = jnp.zeros((N_C,), jnp.float32)
    p["W10"] = _xavier_uniform(ks[9], (HW, N_C, 1, 1))                      # no bias
    p["W12"] = _xavier_uniform(ks[10], (1, NVA2, 1, 1))                     # no bias
    return p


def _circulant_matrix(k6):
    # L6: Conv2d(1,1,(NVA2,N_C), padding='same', padding_mode='circular') as a
    # dense matrix M[(i,j),(i',j')] = K[(i'-i+top)%H, (j'-j+left)%W], matching
    # PyTorch's left/top = (k-1)//2 circular 'same' padding split.
    hk, wk = k6.shape
    top, left = (hk - 1) // 2, (wk - 1) // 2
    ii = np.arange(hk)[:, None, None, None]
    jj = np.arange(wk)[None, :, None, None]
    ip = np.arange(hk)[None, None, :, None]
    jp = np.arange(wk)[None, None, None, :]
    m = k6[(ip - ii + top) % hk, (jp - jj + left) % wk]
    return m.reshape(hk * wk, hk * wk)


def _rotation_matrices(d_ang, n_views, h, w):
    # Per-view dense bilinear-rotation matrices matching
    # torchvision.transforms.functional.rotate(..., BILINEAR, expand=False):
    # rotation about ((w-1)/2, (h-1)/2), grid_sample align_corners=False,
    # zero fill outside, output pixel sampled at R(+theta) of its coords.
    hw = h * w
    mats = np.zeros((n_views, hw, hw), np.float32)
    cx = (w - 1) / 2.0
    cy = (h - 1) / 2.0
    for v in range(n_views):
        a = d_ang * v
        ca, sa = math.cos(a), math.sin(a)
        for i in range(h):
            for j in range(w):
                xp = j - cx
                yp = i - cy
                sx = xp * ca - yp * sa + cx
                sy = xp * sa + yp * ca + cy
                x0 = int(math.floor(sx)); y0 = int(math.floor(sy))
                wx1 = sx - x0; wy1 = sy - y0
                for yc, wy in ((y0, 1.0 - wy1), (y0 + 1, wy1)):
                    for xc, wx in ((x0, 1.0 - wx1), (x0 + 1, wx1)):
                        if 0 <= yc < h and 0 <= xc < w:
                            mats[v, i * w + j, yc * w + xc] += wy * wx
    return mats


def prepare(p):
    q = {}
    W1 = np.asarray(p["W1"]); W2 = np.asarray(p["W2"]); W3 = np.asarray(p["W3"])
    W7 = np.asarray(p["W7"]); W8 = np.asarray(p["W8"])
    b1 = np.asarray(p["b1"]); b2 = np.asarray(p["b2"]); b3 = np.asarray(p["b3"])
    b4 = np.asarray(p["b4"]); b5 = np.asarray(p["b5"])
    b7 = np.asarray(p["b7"]); b8 = np.asarray(p["b8"]); b9 = np.asarray(p["b9"])

    # --- SMALL: column-packed per-channel weights for L1 / L3 / L7 / L8 -------
    small = np.zeros((C1, 16), np.float32)
    small[:, 0:3] = W1[:, 0, 0, :]
    small[:, 3] = b1
    small[:, 4] = b2
    small[0:C7, 5:10] = W7[:, 0, 0, :]
    small[0:C7, 10] = b7
    small[0:3, 11] = W3[0, 0, 0, :]
    small[0, 12] = b3[0]
    small[1, 12] = b8[0]
    q["SMALL"] = jnp.asarray(small)

    # --- MXW: all K-major MXU weights in one slab (8-sublane aligned rows) ----
    mxw = np.zeros((_MXW_ROWS, C1), np.float32)
    mxw[0:_W2S_ROWS] = W2[:, :, 0, :].transpose(2, 0, 1).reshape(3 * C1, C1)
    mxw[_W3B_ROW:_W3B_ROW + 3] = W3[0, 1:1 + C1, 0, :].T
    mxw[_W3C_ROW:_W3C_ROW + 3] = W3[0, 1 + C1:1 + 2 * C1, 0, :].T
    mxw[_W8S_ROW:_W8S_ROW + BETA, 0:C7] = W8[0, :, 0, :].T
    q["MXW"] = jnp.asarray(mxw)

    # --- BROWS: flattened-row biases of L4 / L5 / L9 --------------------------
    brows = np.zeros((3, R), np.float32)
    brows[0] = np.repeat(b4, N_C)        # per output view, repeated per detector
    brows[1] = np.repeat(b5, N_C)
    brows[2] = np.tile(b9, NVA2)         # per detector channel, tiled per view
    q["BROWS"] = jnp.asarray(brows)

    # --- BIG: the four dense (R, R) row-mixing operators ----------------------
    eye_c = np.eye(N_C, dtype=np.float32)
    m4t = np.kron(np.asarray(p["W4"])[:, :, 0, 0], eye_c).T      # L4 kron(W4, I)
    m5t = np.kron(np.asarray(p["W5"])[:, :, 0, 0], eye_c).T      # L5 kron(W5, I)
    m6t = _circulant_matrix(np.asarray(p["W6"])[0, 0]).T         # L6 circulant
    k9t = np.kron(np.eye(NVA2, dtype=np.float32),
                  np.asarray(p["W9"])[:, :, 0, 0]).T             # L9 kron(I, W9)
    q["BIG"] = jnp.asarray(np.stack([m4t, m5t, m6t, k9t]).astype(np.float32))

    # --- CMAT: L10 (Nc->HW), L11 (bilinear rotation) and L12 (view sum) folded
    #     into one (R, HWP) matrix, zero-padded to a full 128-lane slab. Kept
    #     f32: it encodes exactly-folded linear operators.
    W10 = np.asarray(p["W10"])[:, :, 0, 0]                       # (HW, N_C)
    w12 = np.asarray(p["W12"])[0, :, 0, 0]                       # (NVA2,)
    rot = _rotation_matrices(D_ANG, NVA2, HEIGHT, WIDTH)         # (NVA2, HW, HW)
    rw10 = np.einsum("vpq,qc->vcp", rot, W10)                    # (NVA2, N_C, HW)
    cmat = (w12[:, None, None] * rw10).reshape(R, HW)
    cpad = np.zeros((R, HWP), np.float32)
    cpad[:, :HW] = cmat
    q["CMAT"] = jnp.asarray(cpad)
    return q


# ================================= main ======================================

if __name__ == "__main__":
    key = jax.random.PRNGKey(0)
    k_param, k_x = jax.random.split(key)
    params = init_params(k_param)
    packed = prepare(params)
    x = jax.random.normal(k_x, (B, 1, N_V, N_C), jnp.float32)
    out = ictnet_forward(x, packed)
    out = jax.block_until_ready(out)
    assert out.shape == (B, 1, HEIGHT, WIDTH)
    assert bool(jnp.all(jnp.isfinite(out)))
    print("KERNEL_OK")
</pallas_src>

<mosaic_0001>
module attributes {stable_mosaic.version = 11 : i64} {
  func.func @kernel(%arg0: i32, %arg1: memref<1x1x256xf32, #tpu.memory_space<vmem>>, %arg2: memref<4x128x128xf32, #tpu.memory_space<vmem>>, %arg3: memref<128x128xf32, #tpu.memory_space<vmem>>, %arg4: memref<216x64xf32, #tpu.memory_space<vmem>>, %arg5: memref<64x16xf32, #tpu.memory_space<vmem>>, %arg6: memref<3x128xf32, #tpu.memory_space<vmem>>, %arg7: memref<1x2x128xf32, #tpu.memory_space<vmem>>) attributes {dimension_semantics = [#tpu.dimension_semantics<parallel>], iteration_bounds = array<i64: 1>, scalar_prefetch = 0 : i64, scratch_operands = 0 : i64, tpu.core_type = #tpu.core_type<tc>, window_params = [{transform_indices = @transform_0, window_bounds = array<i64: 1, 1, 256>}, {pipeline_mode = #tpu.pipeline_mode<synchronous>, transform_indices = @transform_1, window_bounds = array<i64: 4, 128, 128>}, {pipeline_mode = #tpu.pipeline_mode<synchronous>, transform_indices = @transform_2, window_bounds = array<i64: 128, 128>}, {pipeline_mode = #tpu.pipeline_mode<synchronous>, transform_indices = @transform_3, window_bounds = array<i64: 216, 64>}, {pipeline_mode = #tpu.pipeline_mode<synchronous>, transform_indices = @transform_4, window_bounds = array<i64: 64, 16>}, {pipeline_mode = #tpu.pipeline_mode<synchronous>, transform_indices = @transform_5, window_bounds = array<i64: 3, 128>}, {transform_indices = @transform_6, window_bounds = array<i64: 1, 2, 128>}]} {
    %0 = tpu.iota {dimensions = array<i32: 1>} : vector<1x256xi32>
    %c16_i32 = arith.constant 16 : i32
    %c0_i32 = arith.constant 0 : i32
    %1 = arith.cmpi eq, %c16_i32, %c0_i32 : i32
    %c1_i32 = arith.constant 1 : i32
    %2 = arith.select %1, %c1_i32, %c16_i32 : i32
    %3 = vector.broadcast %2 : i32 to vector<1x256xi32>
    %4 = arith.remsi %0, %3 : vector<1x256xi32>
    %c0_i32_0 = arith.constant 0 : i32
    %5 = vector.broadcast %c0_i32_0 : i32 to vector<1x256xi32>
    %6 = arith.cmpi ne, %4, %5 : vector<1x256xi32>
    %c0_i32_1 = arith.constant 0 : i32
    %7 = vector.broadcast %c0_i32_1 : i32 to vector<1x256xi32>
    %8 = arith.cmpi slt, %4, %7 : vector<1x256xi32>
    %c0_i32_2 = arith.constant 0 : i32
    %9 = arith.cmpi slt, %2, %c0_i32_2 : i32
    %10 = vector.broadcast %9 : i1 to vector<1x256xi1>
    %11 = vector.broadcast %10 : vector<1x256xi1> to vector<1x256xi1>
    %12 = arith.xori %8, %11 : vector<1x256xi1>
    %13 = arith.andi %12, %6 : vector<1x256xi1>
    %14 = vector.broadcast %2 : i32 to vector<1x256xi32>
    %15 = arith.addi %4, %14 : vector<1x256xi32>
    %16 = arith.select %13, %15, %4 : vector<1x256xi1>, vector<1x256xi32>
    %c1_i32_3 = arith.constant 1 : i32
    %17 = vector.broadcast %c1_i32_3 : i32 to vector<1x256xi32>
    %18 = arith.cmpi sge, %16, %17 : vector<1x256xi32>
    %c2_i32 = arith.constant 2 : i32
    %19 = vector.broadcast %c2_i32 : i32 to vector<1x256xi32>
    %20 = arith.cmpi sge, %16, %19 : vector<1x256xi32>
    %c14_i32 = arith.constant 14 : i32
    %21 = vector.broadcast %c14_i32 : i32 to vector<1x256xi32>
    %22 = arith.cmpi sle, %16, %21 : vector<1x256xi32>
    %c13_i32 = arith.constant 13 : i32
    %23 = vector.broadcast %c13_i32 : i32 to vector<1x256xi32>
    %24 = arith.cmpi sle, %16, %23 : vector<1x256xi32>
    %c0 = arith.constant 0 : index
    %c0_4 = arith.constant 0 : index
    %25 = vector.load %arg5[%c0, %c0_4] : memref<64x16xf32, #tpu.memory_space<vmem>>, vector<64x16xf32>
    %26 = vector.extract_strided_slice %25 {offsets = [0, 0], sizes = [64, 3], strides = [1, 1]} : vector<64x16xf32> to vector<64x3xf32>
    %27 = vector.extract_strided_slice %25 {offsets = [0, 3], sizes = [64, 1], strides = [1, 1]} : vector<64x16xf32> to vector<64x1xf32>
    %28 = vector.extract_strided_slice %25 {offsets = [0, 4], sizes = [64, 1], strides = [1, 1]} : vector<64x16xf32> to vector<64x1xf32>
    %29 = vector.extract_strided_slice %25 {offsets = [0, 5], sizes = [16, 5], strides = [1, 1]} : vector<64x16xf32> to vector<16x5xf32>
    %30 = vector.extract_strided_slice %25 {offsets = [0, 10], sizes = [16, 1], strides = [1, 1]} : vector<64x16xf32> to vector<16x1xf32>
    %31 = vector.extract_strided_slice %25 {offsets = [0, 11], sizes = [3, 1], strides = [1, 1]} : vector<64x16xf32> to vector<3x1xf32>
    %32 = vector.extract_strided_slice %25 {offsets = [0, 12], sizes = [1, 1], strides = [1, 1]} : vector<64x16xf32> to vector<1x1xf32>
    %33 = vector.extract_strided_slice %25 {offsets = [1, 12], sizes = [1, 1], strides = [1, 1]} : vector<64x16xf32> to vector<1x1xf32>
    %c0_5 = arith.constant 0 : index
    %c0_6 = arith.constant 0 : index
    %34 = vector.load %arg4[%c0_5, %c0_6] : memref<216x64xf32, #tpu.memory_space<vmem>>, vector<216x64xf32>
    %c0_7 = arith.constant 0 : index
    %c0_8 = arith.constant 0 : index
    %35 = vector.load %arg6[%c0_7, %c0_8] : memref<3x128xf32, #tpu.memory_space<vmem>>, vector<3x128xf32>
    %36 = vector.extract_strided_slice %35 {offsets = [0, 0], sizes = [1, 128], strides = [1, 1]} : vector<3x128xf32> to vector<1x128xf32>
    %37 = vector.extract_strided_slice %35 {offsets = [1, 0], sizes = [1, 128], strides = [1, 1]} : vector<3x128xf32> to vector<1x128xf32>
    %38 = vector.extract_strided_slice %35 {offsets = [2, 0], sizes = [1, 128], strides = [1, 1]} : vector<3x128xf32> to vector<1x128xf32>
    %c0_9 = arith.constant 0 : index
    %c0_10 = arith.constant 0 : index
    %c0_11 = arith.constant 0 : index
    %39 = vector.load %arg1[%c0_9, %c0_10, %c0_11] : memref<1x1x256xf32, #tpu.memory_space<vmem>>, vector<1x1x256xf32>
    %40 = vector.shape_cast %39 : vector<1x1x256xf32> to vector<1x256xf32>
    %41 = vector.extract_strided_slice %26 {offsets = [0, 0], sizes = [64, 1], strides = [1, 1]} : vector<64x3xf32> to vector<64x1xf32>
    %c1_i32_12 = arith.constant 1 : i32
    %42 = tpu.dynamic_rotate %40 by %c1_i32_12 dim 1 : vector<1x256xf32>, i32 -> vector<1x256xf32>
    %cst = arith.constant 0.000000e+00 : f32
    %43 = vector.broadcast %cst : f32 to vector<1x256xf32>
    %44 = arith.select %18, %42, %43 : vector<1x256xi1>, vector<1x256xf32>
    %45 = vector.broadcast %41 : vector<64x1xf32> to vector<64x256xf32>
    %46 = vector.broadcast %44 : vector<1x256xf32> to vector<64x256xf32>
    %47 = arith.mulf %45, %46 : vector<64x256xf32>
    %48 = vector.extract_strided_slice %26 {offsets = [0, 1], sizes = [64, 1], strides = [1, 1]} : vector<64x3xf32> to vector<64x1xf32>
    %49 = vector.broadcast %48 : vector<64x1xf32> to vector<64x256xf32>
    %50 = vector.broadcast %40 : vector<1x256xf32> to vector<64x256xf32>
    %51 = arith.mulf %49, %50 : vector<64x256xf32>
    %52 = arith.addf %47, %51 : vector<64x256xf32>
    %53 = vector.extract_strided_slice %26 {offsets = [0, 2], sizes = [64, 1], strides = [1, 1]} : vector<64x3xf32> to vector<64x1xf32>
    %c255_i32 = arith.constant 255 : i32
    %54 = tpu.dynamic_rotate %40 by %c255_i32 dim 1 : vector<1x256xf32>, i32 -> vector<1x256xf32>
    %cst_13 = arith.constant 0.000000e+00 : f32
    %55 = vector.broadcast %cst_13 : f32 to vector<1x256xf32>
    %56 = arith.select %22, %54, %55 : vector<1x256xi1>, vector<1x256xf32>
    %57 = vector.broadcast %53 : vector<64x1xf32> to vector<64x256xf32>
    %58 = vector.broadcast %56 : vector<1x256xf32> to vector<64x256xf32>
    %59 = arith.mulf %57, %58 : vector<64x256xf32>
    %60 = arith.addf %52, %59 : vector<64x256xf32>
    %61 = vector.broadcast %27 : vector<64x1xf32> to vector<64x256xf32>
    %62 = arith.addf %60, %61 : vector<64x256xf32>
    %63 = math.absf %62 : vector<64x256xf32>
    %cst_14 = arith.constant 9.99999974E-6 : f32
    %64 = vector.broadcast %cst_14 : f32 to vector<64x256xf32>
    %65 = arith.cmpf ogt, %63, %64 : vector<64x256xf32>
    %cst_15 = arith.constant 0.000000e+00 : f32
    %66 = vector.broadcast %cst_15 : f32 to vector<64x256xf32>
    %67 = arith.select %65, %62, %66 : vector<64x256xi1>, vector<64x256xf32>
    %cst_16 = arith.constant dense<0.000000e+00> : vector<216x256xf32>
    %68 = tpu.matmul %34, %67, %cst_16 {dimension_numbers = #tpu.dot_dimension_numbers<[1], [0], [0], [1], [0, 0, 1, 1], [], []>} : vector<216x64xf32>, vector<64x256xf32>, vector<216x256xf32> -> vector<216x256xf32>
    %69 = vector.extract_strided_slice %68 {offsets = [0, 0], sizes = [64, 256], strides = [1, 1]} : vector<216x256xf32> to vector<64x256xf32>
    %c1_i32_17 = arith.constant 1 : i32
    %70 = tpu.dynamic_rotate %69 by %c1_i32_17 dim 1 : vector<64x256xf32>, i32 -> vector<64x256xf32>
    %cst_18 = arith.constant 0.000000e+00 : f32
    %71 = vector.shape_cast %18 : vector<1x256xi1> to vector<1x256xi1>
    %72 = vector.broadcast %71 : vector<1x256xi1> to vector<64x256xi1>
    %73 = vector.broadcast %cst_18 : f32 to vector<64x256xf32>
    %74 = arith.select %72, %70, %73 : vector<64x256xi1>, vector<64x256xf32>
    %75 = vector.extract_strided_slice %68 {offsets = [64, 0], sizes = [64, 256], strides = [1, 1]} : vector<216x256xf32> to vector<64x256xf32>
    %76 = arith.addf %74, %75 : vector<64x256xf32>
    %77 = vector.extract_strided_slice %68 {offsets = [128, 0], sizes = [64, 256], strides = [1, 1]} : vector<216x256xf32> to vector<64x256xf32>
    %c255_i32_19 = arith.constant 255 : i32
    %78 = tpu.dynamic_rotate %77 by %c255_i32_19 dim 1 : vector<64x256xf32>, i32 -> vector<64x256xf32>
    %cst_20 = arith.constant 0.000000e+00 : f32
    %79 = vector.shape_cast %22 : vector<1x256xi1> to vector<1x256xi1>
    %80 = vector.broadcast %79 : vector<1x256xi1> to vector<64x256xi1>
    %81 = vector.broadcast %cst_20 : f32 to vector<64x256xf32>
    %82 = arith.select %80, %78, %81 : vector<64x256xi1>, vector<64x256xf32>
    %83 = arith.addf %76, %82 : vector<64x256xf32>
    %84 = vector.broadcast %28 : vector<64x1xf32> to vector<64x256xf32>
    %85 = arith.addf %83, %84 : vector<64x256xf32>
    %86 = math.absf %85 : vector<64x256xf32>
    %cst_21 = arith.constant 9.99999974E-6 : f32
    %87 = vector.broadcast %cst_21 : f32 to vector<64x256xf32>
    %88 = arith.cmpf ogt, %86, %87 : vector<64x256xf32>
    %cst_22 = arith.constant 0.000000e+00 : f32
    %89 = vector.broadcast %cst_22 : f32 to vector<64x256xf32>
    %90 = arith.select %88, %85, %89 : vector<64x256xi1>, vector<64x256xf32>
    %91 = vector.broadcast %31 : vector<3x1xf32> to vector<3x256xf32>
    %92 = vector.broadcast %40 : vector<1x256xf32> to vector<3x256xf32>
    %93 = arith.mulf %91, %92 : vector<3x256xf32>
    %94 = vector.extract_strided_slice %68 {offsets = [192, 0], sizes = [3, 256], strides = [1, 1]} : vector<216x256xf32> to vector<3x256xf32>
    %95 = arith.addf %93, %94 : vector<3x256xf32>
    %96 = vector.extract_strided_slice %34 {offsets = [200, 0], sizes = [3, 64], strides = [1, 1]} : vector<216x64xf32> to vector<3x64xf32>
    %cst_23 = arith.constant dense<0.000000e+00> : vector<3x256xf32>
    %97 = tpu.matmul %96, %90, %cst_23 {dimension_numbers = #tpu.dot_dimension_numbers<[1], [0], [0], [1], [0, 0, 1, 1], [], []>} : vector<3x64xf32>, vector<64x256xf32>, vector<3x256xf32> -> vector<3x256xf32>
    %98 = arith.addf %95, %97 : vector<3x256xf32>
    %99 = vector.extract_strided_slice %98 {offsets = [0, 0], sizes = [1, 256], strides = [1, 1]} : vector<3x256xf32> to vector<1x256xf32>
    %c1_i32_24 = arith.constant 1 : i32
    %100 = tpu.dynamic_rotate %99 by %c1_i32_24 dim 1 : vector<1x256xf32>, i32 -> vector<1x256xf32>
    %cst_25 = arith.constant 0.000000e+00 : f32
    %101 = vector.broadcast %cst_25 : f32 to vector<1x256xf32>
    %102 = arith.select %18, %100, %101 : vector<1x256xi1>, vector<1x256xf32>
    %103 = vector.extract_strided_slice %98 {offsets = [1, 0], sizes = [1, 256], strides = [1, 1]} : vector<3x256xf32> to vector<1x256xf32>
    %104 = arith.addf %102, %103 : vector<1x256xf32>
    %105 = vector.extract_strided_slice %98 {offsets = [2, 0], sizes = [1, 256], strides = [1, 1]} : vector<3x256xf32> to vector<1x256xf32>
    %c255_i32_26 = arith.constant 255 : i32
    %106 = tpu.dynamic_rotate %105 by %c255_i32_26 dim 1 : vector<1x256xf32>, i32 -> vector<1x256xf32>
    %cst_27 = arith.constant 0.000000e+00 : f32
    %107 = vector.broadcast %cst_27 : f32 to vector<1x256xf32>
    %108 = arith.select %22, %106, %107 : vector<1x256xi1>, vector<1x256xf32>
    %109 = arith.addf %104, %108 : vector<1x256xf32>
    %110 = vector.broadcast %32 : vector<1x1xf32> to vector<1x256xf32>
    %111 = arith.addf %109, %110 : vector<1x256xf32>
    %112 = math.absf %111 : vector<1x256xf32>
    %cst_28 = arith.constant 9.99999974E-6 : f32
    %113 = vector.broadcast %cst_28 : f32 to vector<1x256xf32>
    %114 = arith.cmpf ogt, %112, %113 : vector<1x256xf32>
    %cst_29 = arith.constant 0.000000e+00 : f32
    %115 = vector.broadcast %cst_29 : f32 to vector<1x256xf32>
    %116 = arith.select %114, %111, %115 : vector<1x256xi1>, vector<1x256xf32>
    %117 = vector.extract_strided_slice %116 {offsets = [0, 0], sizes = [1, 128], strides = [1, 1]} : vector<1x256xf32> to vector<1x128xf32>
    %118 = vector.extract_strided_slice %116 {offsets = [0, 128], sizes = [1, 128], strides = [1, 1]} : vector<1x256xf32> to vector<1x128xf32>
    %119 = tpu.concatenate %117, %118 in 0 : vector<1x128xf32>, vector<1x128xf32> -> vector<2x128xf32>
    %c0_30 = arith.constant 0 : index
    %c0_31 = arith.constant 0 : index
    %c0_32 = arith.constant 0 : index
    %120 = vector.load %arg2[%c0_30, %c0_31, %c0_32] : memref<4x128x128xf32, #tpu.memory_space<vmem>>, vector<1x128x128xf32>
    %121 = vector.shape_cast %120 : vector<1x128x128xf32> to vector<128x128xf32>
    %cst_33 = arith.constant dense<0.000000e+00> : vector<2x128xf32>
    %122 = tpu.matmul %119, %121, %cst_33 {dimension_numbers = #tpu.dot_dimension_numbers<[1], [0], [0], [1], [0, 0, 1, 1], [], []>} : vector<2x128xf32>, vector<128x128xf32>, vector<2x128xf32> -> vector<2x128xf32>
    %123 = vector.broadcast %36 : vector<1x128xf32> to vector<2x128xf32>
    %124 = arith.addf %122, %123 : vector<2x128xf32>
    %125 = math.absf %124 : vector<2x128xf32>
    %cst_34 = arith.constant 9.99999993E-9 : f32
    %126 = vector.broadcast %cst_34 : f32 to vector<2x128xf32>
    %127 = arith.cmpf ogt, %125, %126 : vector<2x128xf32>
    %cst_35 = arith.constant 0.000000e+00 : f32
    %128 = vector.broadcast %cst_35 : f32 to vector<2x128xf32>
    %129 = arith.select %127, %124, %128 : vector<2x128xi1>, vector<2x128xf32>
    %c1 = arith.constant 1 : index
    %c0_36 = arith.constant 0 : index
    %c0_37 = arith.constant 0 : index
    %130 = vector.load %arg2[%c1, %c0_36, %c0_37] : memref<4x128x128xf32, #tpu.memory_space<vmem>>, vector<1x128x128xf32>
    %131 = vector.shape_cast %130 : vector<1x128x128xf32> to vector<128x128xf32>
    %cst_38 = arith.constant dense<0.000000e+00> : vector<2x128xf32>
    %132 = tpu.matmul %129, %131, %cst_38 {dimension_numbers = #tpu.dot_dimension_numbers<[1], [0], [0], [1], [0, 0, 1, 1], [], []>} : vector<2x128xf32>, vector<128x128xf32>, vector<2x128xf32> -> vector<2x128xf32>
    %133 = vector.broadcast %37 : vector<1x128xf32> to vector<2x128xf32>
    %134 = arith.addf %132, %133 : vector<2x128xf32>
    %135 = math.absf %134 : vector<2x128xf32>
    %cst_39 = arith.constant 9.99999993E-9 : f32
    %136 = vector.broadcast %cst_39 : f32 to vector<2x128xf32>
    %137 = arith.cmpf ogt, %135, %136 : vector<2x128xf32>
    %cst_40 = arith.constant 0.000000e+00 : f32
    %138 = vector.broadcast %cst_40 : f32 to vector<2x128xf32>
    %139 = arith.select %137, %134, %138 : vector<2x128xi1>, vector<2x128xf32>
    %c2 = arith.constant 2 : index
    %c0_41 = arith.constant 0 : index
    %c0_42 = arith.constant 0 : index
    %140 = vector.load %arg2[%c2, %c0_41, %c0_42] : memref<4x128x128xf32, #tpu.memory_space<vmem>>, vector<1x128x128xf32>
    %141 = vector.shape_cast %140 : vector<1x128x128xf32> to vector<128x128xf32>
    %cst_43 = arith.constant dense<0.000000e+00> : vector<2x128xf32>
    %142 = tpu.matmul %139, %141, %cst_43 {dimension_numbers = #tpu.dot_dimension_numbers<[1], [0], [0], [1], [0, 0, 1, 1], [], []>} : vector<2x128xf32>, vector<128x128xf32>, vector<2x128xf32> -> vector<2x128xf32>
    %143 = vector.extract_strided_slice %142 {offsets = [0, 0], sizes = [1, 128], strides = [1, 1]} : vector<2x128xf32> to vector<1x128xf32>
    %144 = vector.extract_strided_slice %142 {offsets = [1, 0], sizes = [1, 128], strides = [1, 1]} : vector<2x128xf32> to vector<1x128xf32>
    %145 = tpu.concatenate %143, %144 in 1 : vector<1x128xf32>, vector<1x128xf32> -> vector<1x256xf32>
    %146 = vector.extract_strided_slice %29 {offsets = [0, 0], sizes = [16, 1], strides = [1, 1]} : vector<16x5xf32> to vector<16x1xf32>
    %c2_i32_44 = arith.constant 2 : i32
    %147 = tpu.dynamic_rotate %145 by %c2_i32_44 dim 1 : vector<1x256xf32>, i32 -> vector<1x256xf32>
    %cst_45 = arith.constant 0.000000e+00 : f32
    %148 = vector.broadcast %cst_45 : f32 to vector<1x256xf32>
    %149 = arith.select %20, %147, %148 : vector<1x256xi1>, vector<1x256xf32>
    %150 = vector.broadcast %146 : vector<16x1xf32> to vector<16x256xf32>
    %151 = vector.broadcast %149 : vector<1x256xf32> to vector<16x256xf32>
    %152 = arith.mulf %150, %151 : vector<16x256xf32>
    %153 = vector.extract_strided_slice %29 {offsets = [0, 1], sizes = [16, 1], strides = [1, 1]} : vector<16x5xf32> to vector<16x1xf32>
    %c1_i32_46 = arith.constant 1 : i32
    %154 = tpu.dynamic_rotate %145 by %c1_i32_46 dim 1 : vector<1x256xf32>, i32 -> vector<1x256xf32>
    %cst_47 = arith.constant 0.000000e+00 : f32
    %155 = vector.broadcast %cst_47 : f32 to vector<1x256xf32>
    %156 = arith.select %18, %154, %155 : vector<1x256xi1>, vector<1x256xf32>
    %157 = vector.broadcast %153 : vector<16x1xf32> to vector<16x256xf32>
    %158 = vector.broadcast %156 : vector<1x256xf32> to vector<16x256xf32>
    %159 = arith.mulf %157, %158 : vector<16x256xf32>
    %160 = arith.addf %152, %159 : vector<16x256xf32>
    %161 = vector.extract_strided_slice %29 {offsets = [0, 2], sizes = [16, 1], strides = [1, 1]} : vector<16x5xf32> to vector<16x1xf32>
    %162 = vector.broadcast %161 : vector<16x1xf32> to vector<16x256xf32>
    %163 = vector.broadcast %145 : vector<1x256xf32> to vector<16x256xf32>
    %164 = arith.mulf %162, %163 : vector<16x256xf32>
    %165 = arith.addf %160, %164 : vector<16x256xf32>
    %166 = vector.extract_strided_slice %29 {offsets = [0, 3], sizes = [16, 1], strides = [1, 1]} : vector<16x5xf32> to vector<16x1xf32>
    %c255_i32_48 = arith.constant 255 : i32
    %167 = tpu.dynamic_rotate %145 by %c255_i32_48 dim 1 : vector<1x256xf32>, i32 -> vector<1x256xf32>
    %cst_49 = arith.constant 0.000000e+00 : f32
    %168 = vector.broadcast %cst_49 : f32 to vector<1x256xf32>
    %169 = arith.select %22, %167, %168 : vector<1x256xi1>, vector<1x256xf32>
    %170 = vector.broadcast %166 : vector<16x1xf32> to vector<16x256xf32>
    %171 = vector.broadcast %169 : vector<1x256xf32> to vector<16x256xf32>
    %172 = arith.mulf %170, %171 : vector<16x256xf32>
    %173 = arith.addf %165, %172 : vector<16x256xf32>
    %174 = vector.extract_strided_slice %29 {offsets = [0, 4], sizes = [16, 1], strides = [1, 1]} : vector<16x5xf32> to vector<16x1xf32>
    %c254_i32 = arith.constant 254 : i32
    %175 = tpu.dynamic_rotate %145 by %c254_i32 dim 1 : vector<1x256xf32>, i32 -> vector<1x256xf32>
    %cst_50 = arith.constant 0.000000e+00 : f32
    %176 = vector.broadcast %cst_50 : f32 to vector<1x256xf32>
    %177 = arith.select %24, %175, %176 : vector<1x256xi1>, vector<1x256xf32>
    %178 = vector.broadcast %174 : vector<16x1xf32> to vector<16x256xf32>
    %179 = vector.broadcast %177 : vector<1x256xf32> to vector<16x256xf32>
    %180 = arith.mulf %178, %179 : vector<16x256xf32>
    %181 = arith.addf %173, %180 : vector<16x256xf32>
    %182 = vector.broadcast %30 : vector<16x1xf32> to vector<16x256xf32>
    %183 = arith.addf %181, %182 : vector<16x256xf32>
    %184 = math.tanh %183 : vector<16x256xf32>
    %185 = vector.extract_strided_slice %34 {offsets = [208, 0], sizes = [5, 16], strides = [1, 1]} : vector<216x64xf32> to vector<5x16xf32>
    %cst_51 = arith.constant dense<0.000000e+00> : vector<5x256xf32>
    %186 = tpu.matmul %185, %184, %cst_51 {dimension_numbers = #tpu.dot_dimension_numbers<[1], [0], [0], [1], [0, 0, 1, 1], [], []>} : vector<5x16xf32>, vector<16x256xf32>, vector<5x256xf32> -> vector<5x256xf32>
    %187 = vector.extract_strided_slice %186 {offsets = [0, 0], sizes = [1, 256], strides = [1, 1]} : vector<5x256xf32> to vector<1x256xf32>
    %c2_i32_52 = arith.constant 2 : i32
    %188 = tpu.dynamic_rotate %187 by %c2_i32_52 dim 1 : vector<1x256xf32>, i32 -> vector<1x256xf32>
    %cst_53 = arith.constant 0.000000e+00 : f32
    %189 = vector.broadcast %cst_53 : f32 to vector<1x256xf32>
    %190 = arith.select %20, %188, %189 : vector<1x256xi1>, vector<1x256xf32>
    %191 = vector.extract_strided_slice %186 {offsets = [1, 0], sizes = [1, 256], strides = [1, 1]} : vector<5x256xf32> to vector<1x256xf32>
    %c1_i32_54 = arith.constant 1 : i32
    %192 = tpu.dynamic_rotate %191 by %c1_i32_54 dim 1 : vector<1x256xf32>, i32 -> vector<1x256xf32>
    %cst_55 = arith.constant 0.000000e+00 : f32
    %193 = vector.broadcast %cst_55 : f32 to vector<1x256xf32>
    %194 = arith.select %18, %192, %193 : vector<1x256xi1>, vector<1x256xf32>
    %195 = arith.addf %190, %194 : vector<1x256xf32>
    %196 = vector.extract_strided_slice %186 {offsets = [2, 0], sizes = [1, 256], strides = [1, 1]} : vector<5x256xf32> to vector<1x256xf32>
    %197 = arith.addf %195, %196 : vector<1x256xf32>
    %198 = vector.extract_strided_slice %186 {offsets = [3, 0], sizes = [1, 256], strides = [1, 1]} : vector<5x256xf32> to vector<1x256xf32>
    %c255_i32_56 = arith.constant 255 : i32
    %199 = tpu.dynamic_rotate %198 by %c255_i32_56 dim 1 : vector<1x256xf32>, i32 -> vector<1x256xf32>
    %cst_57 = arith.constant 0.000000e+00 : f32
    %200 = vector.broadcast %cst_57 : f32 to vector<1x256xf32>
    %201 = arith.select %22, %199, %200 : vector<1x256xi1>, vector<1x256xf32>
    %202 = arith.addf %197, %201 : vector<1x256xf32>
    %203 = vector.extract_strided_slice %186 {offsets = [4, 0], sizes = [1, 256], strides = [1, 1]} : vector<5x256xf32> to vector<1x256xf32>
    %c254_i32_58 = arith.constant 254 : i32
    %204 = tpu.dynamic_rotate %203 by %c254_i32_58 dim 1 : vector<1x256xf32>, i32 -> vector<1x256xf32>
    %cst_59 = arith.constant 0.000000e+00 : f32
    %205 = vector.broadcast %cst_59 : f32 to vector<1x256xf32>
    %206 = arith.select %24, %204, %205 : vector<1x256xi1>, vector<1x256xf32>
    %207 = arith.addf %202, %206 : vector<1x256xf32>
    %208 = vector.broadcast %33 : vector<1x1xf32> to vector<1x256xf32>
    %209 = arith.addf %207, %208 : vector<1x256xf32>
    %210 = math.tanh %209 : vector<1x256xf32>
    %211 = vector.extract_strided_slice %210 {offsets = [0, 0], sizes = [1, 128], strides = [1, 1]} : vector<1x256xf32> to vector<1x128xf32>
    %212 = vector.extract_strided_slice %210 {offsets = [0, 128], sizes = [1, 128], strides = [1, 1]} : vector<1x256xf32> to vector<1x128xf32>
    %213 = tpu.concatenate %211, %212 in 0 : vector<1x128xf32>, vector<1x128xf32> -> vector<2x128xf32>
    %c3 = arith.constant 3 : index
    %c0_60 = arith.constant 0 : index
    %c0_61 = arith.constant 0 : index
    %214 = vector.load %arg2[%c3, %c0_60, %c0_61] : memref<4x128x128xf32, #tpu.memory_space<vmem>>, vector<1x128x128xf32>
    %215 = vector.shape_cast %214 : vector<1x128x128xf32> to vector<128x128xf32>
    %cst_62 = arith.constant dense<0.000000e+00> : vector<2x128xf32>
    %216 = tpu.matmul %213, %215, %cst_62 {dimension_numbers = #tpu.dot_dimension_numbers<[1], [0], [0], [1], [0, 0, 1, 1], [], []>} : vector<2x128xf32>, vector<128x128xf32>, vector<2x128xf32> -> vector<2x128xf32>
    %217 = vector.broadcast %38 : vector<1x128xf32> to vector<2x128xf32>
    %218 = arith.addf %216, %217 : vector<2x128xf32>
    %219 = math.tanh %218 : vector<2x128xf32>
    %c0_63 = arith.constant 0 : index
    %c0_64 = arith.constant 0 : index
    %220 = vector.load %arg3[%c0_63, %c0_64] : memref<128x128xf32, #tpu.memory_space<vmem>>, vector<128x128xf32>
    %cst_65 = arith.constant dense<0.000000e+00> : vector<2x128xf32>
    %221 = tpu.matmul %219, %220, %cst_65 {dimension_numbers = #tpu.dot_dimension_numbers<[1], [0], [0], [1], [0, 0, 1, 1], [], []>} : vector<2x128xf32>, vector<128x128xf32>, vector<2x128xf32> -> vector<2x128xf32>
    %c0_66 = arith.constant 0 : index
    %c0_67 = arith.constant 0 : index
    %c0_68 = arith.constant 0 : index
    %222 = vector.load %arg7[%c0_66, %c0_67, %c0_68] : memref<1x2x128xf32, #tpu.memory_space<vmem>>, vector<1x2x128xf32>
    %223 = vector.shape_cast %222 : vector<1x2x128xf32> to vector<2x128xf32>
    %224 = vector.shape_cast %221 : vector<2x128xf32> to vector<1x2x128xf32>
    tpu.vector_store %arg7[%c0_66, %c0_67, %c0_68], %224 {strides = array<i32>} : memref<1x2x128xf32, #tpu.memory_space<vmem>>, vector<1x2x128xf32>,
    return
  }
  func.func @transform_0(%arg0: i32) -> (i32, i32, i32) {
    %c0_i32 = arith.constant 0 : i32
    %c0_i32_0 = arith.constant 0 : i32
    %c0_i32_1 = arith.constant 0 : i32
    return %arg0, %c0_i32, %c0_i32_0 : i32, i32, i32
  }
  func.func @transform_1(%arg0: i32) -> (i32, i32, i32) {
    %c0_i32 = arith.constant 0 : i32
    %c0_i32_0 = arith.constant 0 : i32
    %c0_i32_1 = arith.constant 0 : i32
    %c0_i32_2 = arith.constant 0 : i32
    return %c0_i32, %c0_i32_0, %c0_i32_1 : i32, i32, i32
  }
  func.func @transform_2(%arg0: i32) -> (i32, i32) {
    %c0_i32 = arith.constant 0 : i32
    %c0_i32_0 = arith.constant 0 : i32
    %c0_i32_1 = arith.constant 0 : i32
    return %c0_i32, %c0_i32_0 : i32, i32
  }
  func.func @transform_3(%arg0: i32) -> (i32, i32) {
    %c0_i32 = arith.constant 0 : i32
    %c0_i32_0 = arith.constant 0 : i32
    %c0_i32_1 = arith.constant 0 : i32
    return %c0_i32, %c0_i32_0 : i32, i32
  }
  func.func @transform_4(%arg0: i32) -> (i32, i32) {
    %c0_i32 = arith.constant 0 : i32
    %c0_i32_0 = arith.constant 0 : i32
    %c0_i32_1 = arith.constant 0 : i32
    return %c0_i32, %c0_i32_0 : i32, i32
  }
  func.func @transform_5(%arg0: i32) -> (i32, i32) {
    %c0_i32 = arith.constant 0 : i32
    %c0_i32_0 = arith.constant 0 : i32
    %c0_i32_1 = arith.constant 0 : i32
    return %c0_i32, %c0_i32_0 : i32, i32
  }
  func.func @transform_6(%arg0: i32) -> (i32, i32, i32) {
    %c0_i32 = arith.constant 0 : i32
    %c0_i32_0 = arith.constant 0 : i32
    %c0_i32_1 = arith.constant 0 : i32
    return %arg0, %c0_i32, %c0_i32_0 : i32, i32, i32
  }
}

</mosaic_0001>

<llo_original>
// kernel: tpu_custom_call.1
$region0: #{tpu_custom_call.1}
  #allocation0 [shape = 'u32[]', space=smem, size = 0x4, offset = 0x4, fixed_abs, tag = 'smem constant byte address 0x4 - core index']
  #allocation1 [shape = 'u32[144,128]{1,0:T(1,128)}', space=vmem, size = 0x12000, scoped, tag = 'internal scratch']
  %s0 = inlined_call_operand.vmem [shape: f32[1,1,256], index: 0, kind: input, shape index: {}]
  %s1 = inlined_call_operand.hbm [shape: f32[4,128,128], index: 1, kind: input, shape index: {}]
  %s2 = inlined_call_operand.vmem [shape: f32[128,128], index: 2, kind: input, shape index: {}]
  %s3 = inlined_call_operand.vmem [shape: f32[216,64], index: 3, kind: input, shape index: {}]
  %s4 = inlined_call_operand.vmem [shape: f32[64,16], index: 4, kind: input, shape index: {}]
  %s5 = inlined_call_operand.vmem [shape: f32[3,128], index: 5, kind: input, shape index: {}]
  %s6 = inlined_call_operand.hbm [shape: f32[1,2,128], index: 6, kind: output, shape index: {}]
  %s7 = sld [smem:[#allocation0]]
  $region38: #{tpu_custom_call.1} parent=0
    _
  %s9 = ssub.s32 1, %s7
  %s10 = scalar_select 0, %s9, %s7
  $region1: #{tpu_custom_call.1} parent=0
    #allocation2 [shape = 'u8[262144]{0}', space=vmem, size = 0x40000, scoped, tag = 'input window, operand 1, single buffered']
    #allocation3 [shape = 's32[1]{0}', space=sflag, size = 0x4, scoped, tag = 'scoped memory for tpu_custom_call.1']
    #allocation4 [shape = 's32[1]{0}', space=sflag, size = 0x4, scoped, tag = 'scoped memory for tpu_custom_call.1']
    #allocation5 [shape = 'u8[1024]{0}', space=vmem, size = 0x400, scoped, tag = 'output window, operand 0, single buffered']
    %11 = vsyncpa [#allocation3], 0
    %12 = vsyncpa [#allocation4], 0
    // Predicated region
    $region2: #{tpu_custom_call.1} parent=1 // pred_check
      _
    $region3: #{tpu_custom_call.1} parent=1 // pred_check_branch
      %14 = sbr.rel (0) target = $region5
    $region4: #{tpu_custom_call.1} parent=1 // pred_region
      _
    $region5: #{tpu_custom_call.1} parent=1 // pred_fallthru
      _
    // Predicated region
    $region6: #{tpu_custom_call.1} parent=1 // pred_check
      _
    $region7: #{tpu_custom_call.1} parent=1 // pred_check_branch
      %16 = sbr.rel (0) target = $region9
    $region8: #{tpu_custom_call.1} parent=1 // pred_region
      %s18 = ssub.s32 8192, 8192
      %19 = vsyncadd [#allocation3], %s18
      %s20 = sshll.u32 [#allocation2], 4
      %s21 = int_to_ptr.vmem [resolvable:$true] %s20
      %26 = dma.hbm_to_vmem [thread:$0]  %s1, 8192, %s21, [#allocation3], 128, 128, 8
    $region9: #{tpu_custom_call.1} parent=1 // pred_fallthru
      _
    // Predicated region
    $region10: #{tpu_custom_call.1} parent=1 // pred_check
      _
    $region11: #{tpu_custom_call.1} parent=1 // pred_check_branch
      %28 = sbr.rel (0) target = $region13
    $region12: #{tpu_custom_call.1} parent=1 // pred_region
      _
    $region13: #{tpu_custom_call.1} parent=1 // pred_fallthru
      _
    // Predicated region
    $region14: #{tpu_custom_call.1} parent=1 // pred_check
      _
    $region15: #{tpu_custom_call.1} parent=1 // pred_check_branch
      %30 = sbr.rel (0) target = $region17
    $region16: #{tpu_custom_call.1} parent=1 // pred_region
      _
    $region17: #{tpu_custom_call.1} parent=1 // pred_fallthru
      _
    // Predicated region
    $region18: #{tpu_custom_call.1} parent=1 // pred_check
      _
    $region19: #{tpu_custom_call.1} parent=1 // pred_check_branch
      %32 = sbr.rel (0) target = $region21
    $region20: #{tpu_custom_call.1} parent=1 // pred_region
      _
    $region21: #{tpu_custom_call.1} parent=1 // pred_fallthru
      _
    // Predicated region
    $region22: #{tpu_custom_call.1} parent=1 // pred_check
      _
    $region23: #{tpu_custom_call.1} parent=1 // pred_check_branch
      %34 = sbr.rel (0) target = $region25
    $region24: #{tpu_custom_call.1} parent=1 // pred_region
      _
    $region25: #{tpu_custom_call.1} parent=1 // pred_fallthru
      _
    // Predicated region
    $region26: #{tpu_custom_call.1} parent=1 // pred_check
      _
    $region27: #{tpu_custom_call.1} parent=1 // pred_check_branch
      %36 = sbr.rel (0) target = $region29
    $region28: #{tpu_custom_call.1} parent=1 // pred_region
      %37 = dma.done [#allocation3], 8192
    $region29: #{tpu_custom_call.1} parent=1 // pred_fallthru
      _
    %v38 = vlaneseq
    %v39 = vand.u32 %v38, 127
    %v40 = vadd.s32 %v39, 128
    %vm41 = vcmp.lt.s32.totalorder %v39, 0
    %v42 = vsub.s32 0, %v39
    %v43 = vsel %vm41, %v42, %v39
    %v44 = vshrl.u32 %v43, 4
    %v45 = vand.u32 %v43, 15
    %v46 = vsub.s32 0, %v45
    %v47 = vsel %vm41, %v46, %v45
    %vm48 = vcmp.lt.s32.totalorder %v40, 0
    %v49 = vsub.s32 0, %v40
    %v50 = vsel %vm48, %v49, %v40
    %v51 = vshrl.u32 %v50, 4
    %v52 = vand.u32 %v50, 15
    %v53 = vsub.s32 0, %v52
    %v54 = vsel %vm48, %v53, %v52
    %vm55 = vcmp.ne.s32.totalorder %v47, 0
    %vm56 = vcmp.ne.s32.totalorder %v54, 0
    %vm57 = vcmp.lt.s32.totalorder %v47, 0
    %vm58 = vcmp.lt.s32.totalorder %v54, 0
    %vm59 = vmand %vm57, %vm55
    %vm60 = vmand %vm58, %vm56
    %v61 = vadd.s32 %v47, 16
    %v62 = vadd.s32 %v54, 16
    %v63 = vsel %vm59, %v61, %v47
    %v64 = vsel %vm60, %v62, %v54
    %vm65 = vcmp.ge.s32.totalorder %v63, 1
    %vm66 = vcmp.ge.s32.totalorder %v64, 1
    %vm67 = vcmp.ge.s32.totalorder %v63, 2
    %vm68 = vcmp.ge.s32.totalorder %v64, 2
    %vm69 = vcmp.le.s32.totalorder %v63, 14
    %vm70 = vcmp.le.s32.totalorder %v64, 14
    %vm71 = vcmp.le.s32.totalorder %v63, 13
    %vm72 = vcmp.le.s32.totalorder %v64, 13
    %v73 = vld [vmem:[%s4] sm:$0xff]
    %v74 = vld [vmem:[%s4 + $0x8] sm:$0xff]
    %v75 = vld [vmem:[%s4 + $0x10] sm:$0xff]
    %v76 = vld [vmem:[%s4 + $0x18] sm:$0xff]
    %v77 = vld [vmem:[%s4 + $0x20] sm:$0xff]
    %v78 = vld [vmem:[%s4 + $0x28] sm:$0xff]
    %v79 = vld [vmem:[%s4 + $0x30] sm:$0xff]
    %v80 = vld [vmem:[%s4 + $0x38] sm:$0xff]
    %v81 = vld [vmem:[%s3] sm:$0xff]
    %v82 = vld [vmem:[%s3 + $0x8] sm:$0xff]
    %v83 = vld [vmem:[%s3 + $0x10] sm:$0xff]
    %v84 = vld [vmem:[%s3 + $0x18] sm:$0xff]
    %v85 = vld [vmem:[%s3 + $0x20] sm:$0xff]
    %v86 = vld [vmem:[%s3 + $0x28] sm:$0xff]
    %v87 = vld [vmem:[%s3 + $0x30] sm:$0xff]
    %v88 = vld [vmem:[%s3 + $0x38] sm:$0xff]
    %v89 = vld [vmem:[%s3 + $0x40] sm:$0xff]
    %v90 = vld [vmem:[%s3 + $0x48] sm:$0xff]
    %v91 = vld [vmem:[%s3 + $0x50] sm:$0xff]
    %v92 = vld [vmem:[%s3 + $0x58] sm:$0xff]
    %v93 = vld [vmem:[%s3 + $0x60] sm:$0xff]
    %v94 = vld [vmem:[%s3 + $0x68] sm:$0xff]
    %v95 = vld [vmem:[%s3 + $0x70] sm:$0xff]
    %v96 = vld [vmem:[%s3 + $0x78] sm:$0xff]
    %v97 = vld [vmem:[%s3 + $0x80] sm:$0xff]
    %v98 = vld [vmem:[%s3 + $0x88] sm:$0xff]
    %v99 = vld [vmem:[%s3 + $0x90] sm:$0xff]
    %v100 = vld [vmem:[%s3 + $0x98] sm:$0xff]
    %v101 = vld [vmem:[%s3 + $0xa0] sm:$0xff]
    %v102 = vld [vmem:[%s3 + $0xa8] sm:$0xff]
    %v103 = vld [vmem:[%s3 + $0xb0] sm:$0xff]
    %v104 = vld [vmem:[%s3 + $0xb8] sm:$0xff]
    %v105 = vld [vmem:[%s3 + $0xc0] sm:$0xff]
    %v106 = vld [vmem:[%s3 + $0xc8] sm:$0xff]
    %v107 = vld [vmem:[%s3 + $0xd0] sm:$0xff]
    %v108 = vld [vmem:[%s5] sm:$0x7]
    %v109 = vld [vmem:[%s0] sm:$0x3]
    %v111 = vlaneseq
    %v112 = vshrl.u32 %v111, 7
    %v113 = vsub.s32 0, %v112
    %v114 = vrot.slane %v109, %v113
    %v115 = vlaneseq
    %v116 = vshrl.u32 %v115, 7
    %v117 = vsub.s32 1, %v116
    %v118 = vrot.slane %v109, %v117
    %121 = vrot.lane.b32.xlu0 %v114, 1
    %v122 = vpop.permute.xlu0 %121
    %123 = vrot.lane.b32.xlu0 %v118, 1
    %v124 = vpop.permute.xlu0 %123
    %vm125 = vcmp.lt.s32.totalorder %v39, 1
    %v126 = vsel %vm125, %v122, %v124
    %v127 = vsel %vm125, %v124, %v122
    %v128 = vsel %vm65, %v127, 0.0
    %v129 = vsel %vm66, %v126, 0.0
    %131 = vset.pattern.permute.xlu0 0
    %132 = vperm.xlu0 %131, %v73
    %v133 = vpop.permute.xlu0 %132
    %136 = vset.pattern.permute.xlu0 0
    %137 = vperm.xlu0 %136, %v74
    %v138 = vpop.permute.xlu0 %137
    %141 = vset.pattern.permute.xlu0 0
    %142 = vperm.xlu0 %141, %v75
    %v143 = vpop.permute.xlu0 %142
    %146 = vset.pattern.permute.xlu0 0
    %147 = vperm.xlu0 %146, %v76
    %v148 = vpop.permute.xlu0 %147
    %151 = vset.pattern.permute.xlu0 0
    %152 = vperm.xlu0 %151, %v77
    %v153 = vpop.permute.xlu0 %152
    %156 = vset.pattern.permute.xlu0 0
    %157 = vperm.xlu0 %156, %v78
    %v158 = vpop.permute.xlu0 %157
    %161 = vset.pattern.permute.xlu0 0
    %162 = vperm.xlu0 %161, %v79
    %v163 = vpop.permute.xlu0 %162
    %166 = vset.pattern.permute.xlu0 0
    %167 = vperm.xlu0 %166, %v80
    %v168 = vpop.permute.xlu0 %167
    %v170 = vlaneseq
    %v171 = vshrl.u32 %v170, 7
    %v172 = vsub.s32 0, %v171
    %v173 = vrot.slane %v128, %v172
    %v174 = vlaneseq
    %v175 = vshrl.u32 %v174, 7
    %v176 = vsub.s32 0, %v175
    %v177 = vrot.slane %v129, %v176
    %v178 = vmul.f32 %v133, %v173
    %v179 = vmul.f32 %v133, %v177
    %v180 = vmul.f32 %v138, %v173
    %v181 = vmul.f32 %v138, %v177
    %v182 = vmul.f32 %v143, %v173
    %v183 = vmul.f32 %v143, %v177
    %v184 = vmul.f32 %v148, %v173
    %v185 = vmul.f32 %v148, %v177
    %v186 = vmul.f32 %v153, %v173
    %v187 = vmul.f32 %v153, %v177
    %v188 = vmul.f32 %v158, %v173
    %v189 = vmul.f32 %v158, %v177
    %v190 = vmul.f32 %v163, %v173
    %v191 = vmul.f32 %v163, %v177
    %v192 = vmul.f32 %v168, %v173
    %v193 = vmul.f32 %v168, %v177
    %194 = vset.pattern.permute.xlu0 1
    %195 = vperm.xlu0 %194, %v73
    %v196 = vpop.permute.xlu0 %195
    %198 = vset.pattern.permute.xlu0 1
    %199 = vperm.xlu0 %198, %v74
    %v200 = vpop.permute.xlu0 %199
    %202 = vset.pattern.permute.xlu0 1
    %203 = vperm.xlu0 %202, %v75
    %v204 = vpop.permute.xlu0 %203
    %206 = vset.pattern.permute.xlu0 1
    %207 = vperm.xlu0 %206, %v76
    %v208 = vpop.permute.xlu0 %207
    %210 = vset.pattern.permute.xlu0 1
    %211 = vperm.xlu0 %210, %v77
    %v212 = vpop.permute.xlu0 %211
    %214 = vset.pattern.permute.xlu0 1
    %215 = vperm.xlu0 %214, %v78
    %v216 = vpop.permute.xlu0 %215
    %218 = vset.pattern.permute.xlu0 1
    %219 = vperm.xlu0 %218, %v79
    %v220 = vpop.permute.xlu0 %219
    %222 = vset.pattern.permute.xlu0 1
    %223 = vperm.xlu0 %222, %v80
    %v224 = vpop.permute.xlu0 %223
    %v226 = vmul.f32 %v196, %v114
    %v227 = vmul.f32 %v196, %v118
    %v228 = vmul.f32 %v200, %v114
    %v229 = vmul.f32 %v200, %v118
    %v230 = vmul.f32 %v204, %v114
    %v231 = vmul.f32 %v204, %v118
    %v232 = vmul.f32 %v208, %v114
    %v233 = vmul.f32 %v208, %v118
    %v234 = vmul.f32 %v212, %v114
    %v235 = vmul.f32 %v212, %v118
    %v236 = vmul.f32 %v216, %v114
    %v237 = vmul.f32 %v216, %v118
    %v238 = vmul.f32 %v220, %v114
    %v239 = vmul.f32 %v220, %v118
    %v240 = vmul.f32 %v224, %v114
    %v241 = vmul.f32 %v224, %v118
    %v242 = vadd.f32 %v178, %v226
    %v243 = vadd.f32 %v179, %v227
    %v244 = vadd.f32 %v180, %v228
    %v245 = vadd.f32 %v181, %v229
    %v246 = vadd.f32 %v182, %v230
    %v247 = vadd.f32 %v183, %v231
    %v248 = vadd.f32 %v184, %v232
    %v249 = vadd.f32 %v185, %v233
    %v250 = vadd.f32 %v186, %v234
    %v251 = vadd.f32 %v187, %v235
    %v252 = vadd.f32 %v188, %v236
    %v253 = vadd.f32 %v189, %v237
    %v254 = vadd.f32 %v190, %v238
    %v255 = vadd.f32 %v191, %v239
    %v256 = vadd.f32 %v192, %v240
    %v257 = vadd.f32 %v193, %v241
    %258 = vrot.lane.b32.xlu0 %v114, 127
    %v259 = vpop.permute.xlu0 %258
    %260 = vrot.lane.b32.xlu0 %v118, 127
    %v261 = vpop.permute.xlu0 %260
    %vm262 = vcmp.lt.s32.totalorder %v39, 127
    %v263 = vsel %vm262, %v259, %v261
    %v264 = vsel %vm262, %v261, %v259
    %v265 = vsel %vm69, %v263, 0.0
    %v266 = vsel %vm70, %v264, 0.0
    %267 = vset.pattern.permute.xlu0 2
    %268 = vperm.xlu0 %267, %v73
    %v269 = vpop.permute.xlu0 %268
    %271 = vset.pattern.permute.xlu0 2
    %272 = vperm.xlu0 %271, %v74
    %v273 = vpop.permute.xlu0 %272
    %275 = vset.pattern.permute.xlu0 2
    %276 = vperm.xlu0 %275, %v75
    %v277 = vpop.permute.xlu0 %276
    %279 = vset.pattern.permute.xlu0 2
    %280 = vperm.xlu0 %279, %v76
    %v281 = vpop.permute.xlu0 %280
    %283 = vset.pattern.permute.xlu0 2
    %284 = vperm.xlu0 %283, %v77
    %v285 = vpop.permute.xlu0 %284
    %287 = vset.pattern.permute.xlu0 2
    %288 = vperm.xlu0 %287, %v78
    %v289 = vpop.permute.xlu0 %288
    %291 = vset.pattern.permute.xlu0 2
    %292 = vperm.xlu0 %291, %v79
    %v293 = vpop.permute.xlu0 %292
    %295 = vset.pattern.permute.xlu0 2
    %296 = vperm.xlu0 %295, %v80
    %v297 = vpop.permute.xlu0 %296
    %v299 = vlaneseq
    %v300 = vshrl.u32 %v299, 7
    %v301 = vsub.s32 0, %v300
    %v302 = vrot.slane %v265, %v301
    %v303 = vlaneseq
    %v304 = vshrl.u32 %v303, 7
    %v305 = vsub.s32 0, %v304
    %v306 = vrot.slane %v266, %v305
    %v307 = vmul.f32 %v269, %v302
    %v308 = vmul.f32 %v269, %v306
    %v309 = vmul.f32 %v273, %v302
    %v310 = vmul.f32 %v273, %v306
    %v311 = vmul.f32 %v277, %v302
    %v312 = vmul.f32 %v277, %v306
    %v313 = vmul.f32 %v281, %v302
    %v314 = vmul.f32 %v281, %v306
    %v315 = vmul.f32 %v285, %v302
    %v316 = vmul.f32 %v285, %v306
    %v317 = vmul.f32 %v289, %v302
    %v318 = vmul.f32 %v289, %v306
    %v319 = vmul.f32 %v293, %v302
    %v320 = vmul.f32 %v293, %v306
    %v321 = vmul.f32 %v297, %v302
    %v322 = vmul.f32 %v297, %v306
    %v323 = vadd.f32 %v242, %v307
    %v324 = vadd.f32 %v243, %v308
    %v325 = vadd.f32 %v244, %v309
    %v326 = vadd.f32 %v245, %v310
    %v327 = vadd.f32 %v246, %v311
    %v328 = vadd.f32 %v247, %v312
    %v329 = vadd.f32 %v248, %v313
    %v330 = vadd.f32 %v249, %v314
    %v331 = vadd.f32 %v250, %v315
    %v332 = vadd.f32 %v251, %v316
    %v333 = vadd.f32 %v252, %v317
    %v334 = vadd.f32 %v253, %v318
    %v335 = vadd.f32 %v254, %v319
    %v336 = vadd.f32 %v255, %v320
    %v337 = vadd.f32 %v256, %v321
    %v338 = vadd.f32 %v257, %v322
    %339 = vset.pattern.permute.xlu0 3
    %340 = vperm.xlu0 %339, %v73
    %v341 = vpop.permute.xlu0 %340
    %343 = vset.pattern.permute.xlu0 3
    %344 = vperm.xlu0 %343, %v74
    %v345 = vpop.permute.xlu0 %344
    %347 = vset.pattern.permute.xlu0 3
    %348 = vperm.xlu0 %347, %v75
    %v349 = vpop.permute.xlu0 %348
    %351 = vset.pattern.permute.xlu0 3
    %352 = vperm.xlu0 %351, %v76
    %v353 = vpop.permute.xlu0 %352
    %355 = vset.pattern.permute.xlu0 3
    %356 = vperm.xlu0 %355, %v77
    %v357 = vpop.permute.xlu0 %356
    %359 = vset.pattern.permute.xlu0 3
    %360 = vperm.xlu0 %359, %v78
    %v361 = vpop.permute.xlu0 %360
    %363 = vset.pattern.permute.xlu0 3
    %364 = vperm.xlu0 %363, %v79
    %v365 = vpop.permute.xlu0 %364
    %367 = vset.pattern.permute.xlu0 3
    %368 = vperm.xlu0 %367, %v80
    %v369 = vpop.permute.xlu0 %368
    %v371 = vadd.f32 %v323, %v341
    %v372 = vadd.f32 %v324, %v341
    %v373 = vadd.f32 %v325, %v345
    %v374 = vadd.f32 %v326, %v345
    %v375 = vadd.f32 %v327, %v349
    %v376 = vadd.f32 %v328, %v349
    %v377 = vadd.f32 %v329, %v353
    %v378 = vadd.f32 %v330, %v353
    %v379 = vadd.f32 %v331, %v357
    %v380 = vadd.f32 %v332, %v357
    %v381 = vadd.f32 %v333, %v361
    %v382 = vadd.f32 %v334, %v361
    %v383 = vadd.f32 %v335, %v365
    %v384 = vadd.f32 %v336, %v365
    %v385 = vadd.f32 %v337, %v369
    %v386 = vadd.f32 %v338, %v369
    %v387 = vand.u32 2147483647, %v371
    %v388 = vand.u32 2147483647, %v372
    %v389 = vand.u32 2147483647, %v373
    %v390 = vand.u32 2147483647, %v374
    %v391 = vand.u32 2147483647, %v375
    %v392 = vand.u32 2147483647, %v376
    %v393 = vand.u32 2147483647, %v377
    %v394 = vand.u32 2147483647, %v378
    %v395 = vand.u32 2147483647, %v379
    %v396 = vand.u32 2147483647, %v380
    %v397 = vand.u32 2147483647, %v381
    %v398 = vand.u32 2147483647, %v382
    %v399 = vand.u32 2147483647, %v383
    %v400 = vand.u32 2147483647, %v384
    %v401 = vand.u32 2147483647, %v385
    %v402 = vand.u32 2147483647, %v386
    %vm403 = vcmp.gt.f32.partialorder %v387, 1e-05
    %vm404 = vcmp.gt.f32.partialorder %v388, 1e-05
    %vm405 = vcmp.gt.f32.partialorder %v389, 1e-05
    %vm406 = vcmp.gt.f32.partialorder %v390, 1e-05
    %vm407 = vcmp.gt.f32.partialorder %v391, 1e-05
    %vm408 = vcmp.gt.f32.partialorder %v392, 1e-05
    %vm409 = vcmp.gt.f32.partialorder %v393, 1e-05
    %vm410 = vcmp.gt.f32.partialorder %v394, 1e-05
    %vm411 = vcmp.gt.f32.partialorder %v395, 1e-05
    %vm412 = vcmp.gt.f32.partialorder %v396, 1e-05
    %vm413 = vcmp.gt.f32.partialorder %v397, 1e-05
    %vm414 = vcmp.gt.f32.partialorder %v398, 1e-05
    %vm415 = vcmp.gt.f32.partialorder %v399, 1e-05
    %vm416 = vcmp.gt.f32.partialorder %v400, 1e-05
    %vm417 = vcmp.gt.f32.partialorder %v401, 1e-05
    %vm418 = vcmp.gt.f32.partialorder %v402, 1e-05
    %v419 = vsel %vm403, %v371, 0.0
    %v420 = vsel %vm404, %v372, 0.0
    %v421 = vsel %vm405, %v373, 0.0
    %v422 = vsel %vm406, %v374, 0.0
    %v423 = vsel %vm407, %v375, 0.0
    %v424 = vsel %vm408, %v376, 0.0
    %v425 = vsel %vm409, %v377, 0.0
    %v426 = vsel %vm410, %v378, 0.0
    %v427 = vsel %vm411, %v379, 0.0
    %v428 = vsel %vm412, %v380, 0.0
    %v429 = vsel %vm413, %v381, 0.0
    %v430 = vsel %vm414, %v382, 0.0
    %v431 = vsel %vm415, %v383, 0.0
    %v432 = vsel %vm416, %v384, 0.0
    %v433 = vsel %vm417, %v385, 0.0
    %v434 = vsel %vm418, %v386, 0.0
    %vm435 = vcmask 523264
    %v437 = vsel %vm435, %v81, 0
    %v440 = vsel %vm435, %v82, 0
    %v443 = vsel %vm435, %v83, 0
    %v446 = vsel %vm435, %v84, 0
    %v449 = vsel %vm435, %v85, 0
    %v452 = vsel %vm435, %v86, 0
    %v455 = vsel %vm435, %v87, 0
    %v458 = vsel %vm435, %v88, 0
    %v461 = vsel %vm435, %v89, 0
    %v464 = vsel %vm435, %v90, 0
    %v467 = vsel %vm435, %v91, 0
    %v470 = vsel %vm435, %v92, 0
    %v473 = vsel %vm435, %v93, 0
    %v476 = vsel %vm435, %v94, 0
    %v479 = vsel %vm435, %v95, 0
    %v482 = vsel %vm435, %v96, 0
    %v485 = vsel %vm435, %v97, 0
    %v488 = vsel %vm435, %v98, 0
    %v491 = vsel %vm435, %v99, 0
    %v494 = vsel %vm435, %v100, 0
    %v497 = vsel %vm435, %v101, 0
    %v500 = vsel %vm435, %v102, 0
    %v503 = vsel %vm435, %v103, 0
    %v506 = vsel %vm435, %v104, 0
    %v509 = vsel %vm435, %v105, 0
    %v512 = vsel %vm435, %v106, 0
    %v515 = vsel %vm435, %v107, 0
    %517 = vmatprep.subr.mxu0 %v420
    %518 = vmatpush1.msra.mxu0 %v419
    %519 = vmatprep.subr.mxu0 %v422
    %520 = vmatpush1.msra.mxu0 %v421
    %521 = vmatprep.subr.mxu0 %v424
    %522 = vmatpush1.msra.mxu0 %v423
    %523 = vmatprep.subr.mxu0 %v426
    %524 = vmatpush1.msra.mxu0 %v425
    %525 = vmatprep.subr.mxu0 %v428
    %526 = vmatpush1.msra.mxu0 %v427
    %527 = vmatprep.subr.mxu0 %v430
    %528 = vmatpush1.msra.mxu0 %v429
    %529 = vmatprep.subr.mxu0 %v432
    %530 = vmatpush1.msra.mxu0 %v431
    %531 = vmatprep.subr.mxu0 %v434
    %532 = vmatpush1.msra.mxu0 %v433
    %533 = vmatprep.subr.mxu0 0.0
    %534 = vmatpush1.msra.mxu0 0.0
    %535 = vmatprep.subr.mxu0 0.0
    %536 = vmatpush1.msra.mxu0 0.0
    %537 = vmatprep.subr.mxu0 0.0
    %538 = vmatpush1.msra.mxu0 0.0
    %539 = vmatprep.subr.mxu0 0.0
    %540 = vmatpush1.msra.mxu0 0.0
    %541 = vmatprep.subr.mxu0 0.0
    %542 = vmatpush1.msra.mxu0 0.0
    %543 = vmatprep.subr.mxu0 0.0
    %544 = vmatpush1.msra.mxu0 0.0
    %545 = vmatprep.subr.mxu0 0.0
    %546 = vmatpush1.msra.mxu0 0.0
    %547 = vmatprep.subr.mxu0 0.0
    %548 = vmatpush1.msra.mxu0 0.0
    %549 = vmatprep.subr.mxu0 0.0
    %550 = vmatpush1.msra.mxu0 0.0
    %551 = vmatprep.subr.mxu0 0.0
    %552 = vmatpush1.msra.mxu0 0.0
    %553 = vmatprep.subr.mxu0 0.0
    %554 = vmatpush1.msra.mxu0 0.0
    %555 = vmatprep.subr.mxu0 0.0
    %556 = vmatpush1.msra.mxu0 0.0
    %557 = vmatprep.subr.mxu0 0.0
    %558 = vmatpush1.msra.mxu0 0.0
    %559 = vmatprep.subr.mxu0 0.0
    %560 = vmatpush1.msra.mxu0 0.0
    %561 = vmatprep.subr.mxu0 0.0
    %562 = vmatpush1.msra.mxu0 0.0
    %563 = vmatprep.subr.mxu0 0.0
    %564 = vmatpush1.msra.mxu0 0.0
    %565 = vmatprep.subr.mxu0 0.0
    %566 = vmatpush1.msra.mxu0 0.0
    %567 = vmatprep.subr.mxu0 0.0
    %568 = vmatpush1.msra.mxu0 0.0
    %569 = vmatprep.subr.mxu0 0.0
    %570 = vmatpush1.msra.mxu0 0.0
    %571 = vmatprep.subr.mxu0 0.0
    %572 = vmatpush1.msra.mxu0 0.0
    %573 = vmatprep.subr.mxu0 0.0
    %574 = vmatpush1.msra.mxu0 0.0
    %575 = vmatprep.subr.mxu0 0.0
    %576 = vmatpush1.msra.mxu0 0.0
    %577 = vmatprep.subr.mxu0 0.0
    %578 = vmatpush1.msra.mxu0 0.0
    %579 = vmatprep.subr.mxu0 0.0
    %580 = vmatpush1.msra.mxu0 0.0
    %581 = vmatprep.mubr.f32.mxu0 0.0
    %582 = vmatmul.mubr.f32.gmra.mrb[0].mxu0 %v437
    %v583 = vpop.f32.mrb[0].mxu0
    %v584 = vadd.f32 0.0, %v583
    %v585 = vpop.f32.mrb[0].mxu0
    %v586 = vadd.f32 0.0, %v585
    %587 = vmatprep.mubr.f32.mxu0 0.0
    %588 = vmatmul.mubr.f32.gmra.mrb[0].mxu0 %v440
    %v589 = vpop.f32.mrb[0].mxu0
    %v590 = vadd.f32 0.0, %v589
    %v591 = vpop.f32.mrb[0].mxu0
    %v592 = vadd.f32 0.0, %v591
    %593 = vmatprep.mubr.f32.mxu0 0.0
    %594 = vmatmul.mubr.f32.gmra.mrb[0].mxu0 %v443
    %v595 = vpop.f32.mrb[0].mxu0
    %v596 = vadd.f32 0.0, %v595
    %v597 = vpop.f32.mrb[0].mxu0
    %v598 = vadd.f32 0.0, %v597
    %599 = vmatprep.mubr.f32.mxu0 0.0
    %600 = vmatmul.mubr.f32.gmra.mrb[0].mxu0 %v446
    %v601 = vpop.f32.mrb[0].mxu0
    %v602 = vadd.f32 0.0, %v601
    %v603 = vpop.f32.mrb[0].mxu0
    %v604 = vadd.f32 0.0, %v603
    %605 = vmatprep.mubr.f32.mxu0 0.0
    %606 = vmatmul.mubr.f32.gmra.mrb[0].mxu0 %v449
    %v607 = vpop.f32.mrb[0].mxu0
    %v608 = vadd.f32 0.0, %v607
    %v609 = vpop.f32.mrb[0].mxu0
    %v610 = vadd.f32 0.0, %v609
    %611 = vmatprep.mubr.f32.mxu0 0.0
    %612 = vmatmul.mubr.f32.gmra.mrb[0].mxu0 %v452
    %v613 = vpop.f32.mrb[0].mxu0
    %v614 = vadd.f32 0.0, %v613
    %v615 = vpop.f32.mrb[0].mxu0
    %v616 = vadd.f32 0.0, %v615
    %617 = vmatprep.mubr.f32.mxu0 0.0
    %618 = vmatmul.mubr.f32.gmra.mrb[0].mxu0 %v455
    %v619 = vpop.f32.mrb[0].mxu0
    %v620 = vadd.f32 0.0, %v619
    %v621 = vpop.f32.mrb[0].mxu0
    %v622 = vadd.f32 0.0, %v621
    %623 = vmatprep.mubr.f32.mxu0 0.0
    %624 = vmatmul.mubr.f32.gmra.mrb[0].mxu0 %v458
    %v625 = vpop.f32.mrb[0].mxu0
    %v626 = vadd.f32 0.0, %v625
    %v627 = vpop.f32.mrb[0].mxu0
    %v628 = vadd.f32 0.0, %v627
    %629 = vmatprep.mubr.f32.mxu0 0.0
    %630 = vmatmul.mubr.f32.gmra.mrb[0].mxu0 %v461
    %v631 = vpop.f32.mrb[0].mxu0
    %v632 = vadd.f32 0.0, %v631
    %v633 = vpop.f32.mrb[0].mxu0
    %v634 = vadd.f32 0.0, %v633
    %635 = vmatprep.mubr.f32.mxu0 0.0
    %636 = vmatmul.mubr.f32.gmra.mrb[0].mxu0 %v464
    %v637 = vpop.f32.mrb[0].mxu0
    %v638 = vadd.f32 0.0, %v637
    %v639 = vpop.f32.mrb[0].mxu0
    %v640 = vadd.f32 0.0, %v639
    %641 = vmatprep.mubr.f32.mxu0 0.0
    %642 = vmatmul.mubr.f32.gmra.mrb[0].mxu0 %v467
    %v643 = vpop.f32.mrb[0].mxu0
    %v644 = vadd.f32 0.0, %v643
    %v645 = vpop.f32.mrb[0].mxu0
    %v646 = vadd.f32 0.0, %v645
    %647 = vmatprep.mubr.f32.mxu0 0.0
    %648 = vmatmul.mubr.f32.gmra.mrb[0].mxu0 %v470
    %v649 = vpop.f32.mrb[0].mxu0
    %v650 = vadd.f32 0.0, %v649
    %v651 = vpop.f32.mrb[0].mxu0
    %v652 = vadd.f32 0.0, %v651
    %653 = vmatprep.mubr.f32.mxu0 0.0
    %654 = vmatmul.mubr.f32.gmra.mrb[0].mxu0 %v473
    %v655 = vpop.f32.mrb[0].mxu0
    %v656 = vadd.f32 0.0, %v655
    %v657 = vpop.f32.mrb[0].mxu0
    %v658 = vadd.f32 0.0, %v657
    %659 = vmatprep.mubr.f32.mxu0 0.0
    %660 = vmatmul.mubr.f32.gmra.mrb[0].mxu0 %v476
    %v661 = vpop.f32.mrb[0].mxu0
    %v662 = vadd.f32 0.0, %v661
    %v663 = vpop.f32.mrb[0].mxu0
    %v664 = vadd.f32 0.0, %v663
    %665 = vmatprep.mubr.f32.mxu0 0.0
    %666 = vmatmul.mubr.f32.gmra.mrb[0].mxu0 %v479
    %v667 = vpop.f32.mrb[0].mxu0
    %v668 = vadd.f32 0.0, %v667
    %v669 = vpop.f32.mrb[0].mxu0
    %v670 = vadd.f32 0.0, %v669
    %671 = vmatprep.mubr.f32.mxu0 0.0
    %672 = vmatmul.mubr.f32.gmra.mrb[0].mxu0 %v482
    %v673 = vpop.f32.mrb[0].mxu0
    %v674 = vadd.f32 0.0, %v673
    %v675 = vpop.f32.mrb[0].mxu0
    %v676 = vadd.f32 0.0, %v675
    %677 = vmatprep.mubr.f32.mxu0 0.0
    %678 = vmatmul.mubr.f32.gmra.mrb[0].mxu0 %v485
    %v679 = vpop.f32.mrb[0].mxu0
    %v680 = vadd.f32 0.0, %v679
    %v681 = vpop.f32.mrb[0].mxu0
    %v682 = vadd.f32 0.0, %v681
    %683 = vmatprep.mubr.f32.mxu0 0.0
    %684 = vmatmul.mubr.f32.gmra.mrb[0].mxu0 %v488
    %v685 = vpop.f32.mrb[0].mxu0
    %v686 = vadd.f32 0.0, %v685
    %v687 = vpop.f32.mrb[0].mxu0
    %v688 = vadd.f32 0.0, %v687
    %689 = vmatprep.mubr.f32.mxu0 0.0
    %690 = vmatmul.mubr.f32.gmra.mrb[0].mxu0 %v491
    %v691 = vpop.f32.mrb[0].mxu0
    %v692 = vadd.f32 0.0, %v691
    %v693 = vpop.f32.mrb[0].mxu0
    %v694 = vadd.f32 0.0, %v693
    %695 = vmatprep.mubr.f32.mxu0 0.0
    %696 = vmatmul.mubr.f32.gmra.mrb[0].mxu0 %v494
    %v697 = vpop.f32.mrb[0].mxu0
    %v698 = vadd.f32 0.0, %v697
    %v699 = vpop.f32.mrb[0].mxu0
    %v700 = vadd.f32 0.0, %v699
    %701 = vmatprep.mubr.f32.mxu0 0.0
    %702 = vmatmul.mubr.f32.gmra.mrb[0].mxu0 %v497
    %v703 = vpop.f32.mrb[0].mxu0
    %v704 = vadd.f32 0.0, %v703
    %v705 = vpop.f32.mrb[0].mxu0
    %v706 = vadd.f32 0.0, %v705
    %707 = vmatprep.mubr.f32.mxu0 0.0
    %708 = vmatmul.mubr.f32.gmra.mrb[0].mxu0 %v500
    %v709 = vpop.f32.mrb[0].mxu0
    %v710 = vadd.f32 0.0, %v709
    %v711 = vpop.f32.mrb[0].mxu0
    %v712 = vadd.f32 0.0, %v711
    %713 = vmatprep.mubr.f32.mxu0 0.0
    %714 = vmatmul.mubr.f32.gmra.mrb[0].mxu0 %v503
    %v715 = vpop.f32.mrb[0].mxu0
    %v716 = vadd.f32 0.0, %v715
    %v717 = vpop.f32.mrb[0].mxu0
    %v718 = vadd.f32 0.0, %v717
    %719 = vmatprep.mubr.f32.mxu0 0.0
    %720 = vmatmul.mubr.f32.gmra.mrb[0].mxu0 %v506
    %v721 = vpop.f32.mrb[0].mxu0
    %v722 = vadd.f32 0.0, %v721
    %v723 = vpop.f32.mrb[0].mxu0
    %v724 = vadd.f32 0.0, %v723
    %725 = vmatprep.mubr.f32.mxu0 0.0
    %726 = vmatmul.mubr.f32.gmra.mrb[0].mxu0 %v509
    %v727 = vpop.f32.mrb[0].mxu0
    %v728 = vadd.f32 0.0, %v727
    %v729 = vpop.f32.mrb[0].mxu0
    %v730 = vadd.f32 0.0, %v729
    %731 = vmatprep.mubr.f32.mxu0 0.0
    %732 = vmatmul.mubr.f32.gmra.mrb[0].mxu0 %v512
    %v733 = vpop.f32.mrb[0].mxu0
    %v734 = vpop.f32.mrb[0].mxu0
    %735 = vmatprep.mubr.f32.mxu0 0.0
    %736 = vmatmul.mubr.f32.gmra.mrb[0].mxu0 %v515
    %v737 = vpop.f32.mrb[0].mxu0
    %v738 = vpop.f32.mrb[0].mxu0
    %739 = vdwg.mxu0
    %740 = vrot.lane.b32.xlu0 %v584, 1
    %v741 = vpop.permute.xlu0 %740
    %742 = vrot.lane.b32.xlu0 %v590, 1
    %v743 = vpop.permute.xlu0 %742
    %744 = vrot.lane.b32.xlu0 %v596, 1
    %v745 = vpop.permute.xlu0 %744
    %746 = vrot.lane.b32.xlu0 %v602, 1
    %v747 = vpop.permute.xlu0 %746
    %748 = vrot.lane.b32.xlu0 %v608, 1
    %v749 = vpop.permute.xlu0 %748
    %750 = vrot.lane.b32.xlu0 %v614, 1
    %v751 = vpop.permute.xlu0 %750
    %752 = vrot.lane.b32.xlu0 %v620, 1
    %v753 = vpop.permute.xlu0 %752
    %754 = vrot.lane.b32.xlu0 %v626, 1
    %v755 = vpop.permute.xlu0 %754
    %756 = vrot.lane.b32.xlu0 %v586, 1
    %v757 = vpop.permute.xlu0 %756
    %758 = vrot.lane.b32.xlu0 %v592, 1
    %v759 = vpop.permute.xlu0 %758
    %760 = vrot.lane.b32.xlu0 %v598, 1
    %v761 = vpop.permute.xlu0 %760
    %762 = vrot.lane.b32.xlu0 %v604, 1
    %v763 = vpop.permute.xlu0 %762
    %764 = vrot.lane.b32.xlu0 %v610, 1
    %v765 = vpop.permute.xlu0 %764
    %766 = vrot.lane.b32.xlu0 %v616, 1
    %v767 = vpop.permute.xlu0 %766
    %768 = vrot.lane.b32.xlu0 %v622, 1
    %v769 = vpop.permute.xlu0 %768
    %770 = vrot.lane.b32.xlu0 %v628, 1
    %v771 = vpop.permute.xlu0 %770
    %v772 = vsel %vm125, %v741, %v757
    %v773 = vsel %vm125, %v743, %v759
    %v774 = vsel %vm125, %v745, %v761
    %v775 = vsel %vm125, %v747, %v763
    %v776 = vsel %vm125, %v749, %v765
    %v777 = vsel %vm125, %v751, %v767
    %v778 = vsel %vm125, %v753, %v769
    %v779 = vsel %vm125, %v755, %v771
    %v780 = vsel %vm125, %v757, %v741
    %v781 = vsel %vm125, %v759, %v743
    %v782 = vsel %vm125, %v761, %v745
    %v783 = vsel %vm125, %v763, %v747
    %v784 = vsel %vm125, %v765, %v749
    %v785 = vsel %vm125, %v767, %v751
    %v786 = vsel %vm125, %v769, %v753
    %v787 = vsel %vm125, %v771, %v755
    %v788 = vsel %vm65, 1, 0
    %v789 = vsel %vm66, 1, 0
    %vm790 = vcmp.eq.s32.totalorder %v788, 1
    %vm791 = vcmp.eq.s32.totalorder %v789, 1
    %v792 = vsel %vm790, %v780, 0.0
    %v793 = vsel %vm791, %v772, 0.0
    %v794 = vsel %vm790, %v781, 0.0
    %v795 = vsel %vm791, %v773, 0.0
    %v796 = vsel %vm790, %v782, 0.0
    %v797 = vsel %vm791, %v774, 0.0
    %v798 = vsel %vm790, %v783, 0.0
    %v799 = vsel %vm791, %v775, 0.0
    %v800 = vsel %vm790, %v784, 0.0
    %v801 = vsel %vm791, %v776, 0.0
    %v802 = vsel %vm790, %v785, 0.0
    %v803 = vsel %vm791, %v777, 0.0
    %v804 = vsel %vm790, %v786, 0.0
    %v805 = vsel %vm791, %v778, 0.0
    %v806 = vsel %vm790, %v787, 0.0
    %v807 = vsel %vm791, %v779, 0.0
    %v808 = vadd.f32 %v792, %v632
    %v809 = vadd.f32 %v793, %v634
    %v810 = vadd.f32 %v794, %v638
    %v811 = vadd.f32 %v795, %v640
    %v812 = vadd.f32 %v796, %v644
    %v813 = vadd.f32 %v797, %v646
    %v814 = vadd.f32 %v798, %v650
    %v815 = vadd.f32 %v799, %v652
    %v816 = vadd.f32 %v800, %v656
    %v817 = vadd.f32 %v801, %v658
    %v818 = vadd.f32 %v802, %v662
    %v819 = vadd.f32 %v803, %v664
    %v820 = vadd.f32 %v804, %v668
    %v821 = vadd.f32 %v805, %v670
    %v822 = vadd.f32 %v806, %v674
    %v823 = vadd.f32 %v807, %v676
    %824 = vrot.lane.b32.xlu0 %v680, 127
    %v825 = vpop.permute.xlu0 %824
    %826 = vrot.lane.b32.xlu0 %v686, 127
    %v827 = vpop.permute.xlu0 %826
    %828 = vrot.lane.b32.xlu0 %v692, 127
    %v829 = vpop.permute.xlu0 %828
    %830 = vrot.lane.b32.xlu0 %v698, 127
    %v831 = vpop.permute.xlu0 %830
    %832 = vrot.lane.b32.xlu0 %v704, 127
    %v833 = vpop.permute.xlu0 %832
    %834 = vrot.lane.b32.xlu0 %v710, 127
    %v835 = vpop.permute.xlu0 %834
    %836 = vrot.lane.b32.xlu0 %v716, 127
    %v837 = vpop.permute.xlu0 %836
    %838 = vrot.lane.b32.xlu0 %v722, 127
    %v839 = vpop.permute.xlu0 %838
    %840 = vrot.lane.b32.xlu0 %v682, 127
    %v841 = vpop.permute.xlu0 %840
    %842 = vrot.lane.b32.xlu0 %v688, 127
    %v843 = vpop.permute.xlu0 %842
    %844 = vrot.lane.b32.xlu0 %v694, 127
    %v845 = vpop.permute.xlu0 %844
    %846 = vrot.lane.b32.xlu0 %v700, 127
    %v847 = vpop.permute.xlu0 %846
    %848 = vrot.lane.b32.xlu0 %v706, 127
    %v849 = vpop.permute.xlu0 %848
    %850 = vrot.lane.b32.xlu0 %v712, 127
    %v851 = vpop.permute.xlu0 %850
    %852 = vrot.lane.b32.xlu0 %v718, 127
    %v853 = vpop.permute.xlu0 %852
    %854 = vrot.lane.b32.xlu0 %v724, 127
    %v855 = vpop.permute.xlu0 %854
    %v856 = vsel %vm262, %v825, %v841
    %v857 = vsel %vm262, %v827, %v843
    %v858 = vsel %vm262, %v829, %v845
    %v859 = vsel %vm262, %v831, %v847
    %v860 = vsel %vm262, %v833, %v849
    %v861 = vsel %vm262, %v835, %v851
    %v862 = vsel %vm262, %v837, %v853
    %v863 = vsel %vm262, %v839, %v855
    %v864 = vsel %vm262, %v841, %v825
    %v865 = vsel %vm262, %v843, %v827
    %v866 = vsel %vm262, %v845, %v829
    %v867 = vsel %vm262, %v847, %v831
    %v868 = vsel %vm262, %v849, %v833
    %v869 = vsel %vm262, %v851, %v835
    %v870 = vsel %vm262, %v853, %v837
    %v871 = vsel %vm262, %v855, %v839
    %v872 = vsel %vm69, 1, 0
    %v873 = vsel %vm70, 1, 0
    %vm874 = vcmp.eq.s32.totalorder %v872, 1
    %vm875 = vcmp.eq.s32.totalorder %v873, 1
    %v876 = vsel %vm874, %v856, 0.0
    %v877 = vsel %vm875, %v864, 0.0
    %v878 = vsel %vm874, %v857, 0.0
    %v879 = vsel %vm875, %v865, 0.0
    %v880 = vsel %vm874, %v858, 0.0
    %v881 = vsel %vm875, %v866, 0.0
    %v882 = vsel %vm874, %v859, 0.0
    %v883 = vsel %vm875, %v867, 0.0
    %v884 = vsel %vm874, %v860, 0.0
    %v885 = vsel %vm875, %v868, 0.0
    %v886 = vsel %vm874, %v861, 0.0
    %v887 = vsel %vm875, %v869, 0.0
    %v888 = vsel %vm874, %v862, 0.0
    %v889 = vsel %vm875, %v870, 0.0
    %v890 = vsel %vm874, %v863, 0.0
    %v891 = vsel %vm875, %v871, 0.0
    %v892 = vadd.f32 %v808, %v876
    %v893 = vadd.f32 %v809, %v877
    %v894 = vadd.f32 %v810, %v878
    %v895 = vadd.f32 %v811, %v879
    %v896 = vadd.f32 %v812, %v880
    %v897 = vadd.f32 %v813, %v881
    %v898 = vadd.f32 %v814, %v882
    %v899 = vadd.f32 %v815, %v883
    %v900 = vadd.f32 %v816, %v884
    %v901 = vadd.f32 %v817, %v885
    %v902 = vadd.f32 %v818, %v886
    %v903 = vadd.f32 %v819, %v887
    %v904 = vadd.f32 %v820, %v888
    %v905 = vadd.f32 %v821, %v889
    %v906 = vadd.f32 %v822, %v890
    %v907 = vadd.f32 %v823, %v891
    %908 = vset.pattern.permute.xlu0 4
    %909 = vperm.xlu0 %908, %v73
    %v910 = vpop.permute.xlu0 %909
    %912 = vset.pattern.permute.xlu0 4
    %913 = vperm.xlu0 %912, %v74
    %v914 = vpop.permute.xlu0 %913
    %916 = vset.pattern.permute.xlu0 4
    %917 = vperm.xlu0 %916, %v75
    %v918 = vpop.permute.xlu0 %917
    %920 = vset.pattern.permute.xlu0 4
    %921 = vperm.xlu0 %920, %v76
    %v922 = vpop.permute.xlu0 %921
    %924 = vset.pattern.permute.xlu0 4
    %925 = vperm.xlu0 %924, %v77
    %v926 = vpop.permute.xlu0 %925
    %928 = vset.pattern.permute.xlu0 4
    %929 = vperm.xlu0 %928, %v78
    %v930 = vpop.permute.xlu0 %929
    %932 = vset.pattern.permute.xlu0 4
    %933 = vperm.xlu0 %932, %v79
    %v934 = vpop.permute.xlu0 %933
    %936 = vset.pattern.permute.xlu0 4
    %937 = vperm.xlu0 %936, %v80
    %v938 = vpop.permute.xlu0 %937
    %v940 = vadd.f32 %v892, %v910
    %v941 = vadd.f32 %v893, %v910
    %v942 = vadd.f32 %v894, %v914
    %v943 = vadd.f32 %v895, %v914
    %v944 = vadd.f32 %v896, %v918
    %v945 = vadd.f32 %v897, %v918
    %v946 = vadd.f32 %v898, %v922
    %v947 = vadd.f32 %v899, %v922
    %v948 = vadd.f32 %v900, %v926
    %v949 = vadd.f32 %v901, %v926
    %v950 = vadd.f32 %v902, %v930
    %v951 = vadd.f32 %v903, %v930
    %v952 = vadd.f32 %v904, %v934
    %v953 = vadd.f32 %v905, %v934
    %v954 = vadd.f32 %v906, %v938
    %v955 = vadd.f32 %v907, %v938
    %v956 = vand.u32 2147483647, %v940
    %v957 = vand.u32 2147483647, %v941
    %v958 = vand.u32 2147483647, %v942
    %v959 = vand.u32 2147483647, %v943
    %v960 = vand.u32 2147483647, %v944
    %v961 = vand.u32 2147483647, %v945
    %v962 = vand.u32 2147483647, %v946
    %v963 = vand.u32 2147483647, %v947
    %v964 = vand.u32 2147483647, %v948
    %v965 = vand.u32 2147483647, %v949
    %v966 = vand.u32 2147483647, %v950
    %v967 = vand.u32 2147483647, %v951
    %v968 = vand.u32 2147483647, %v952
    %v969 = vand.u32 2147483647, %v953
    %v970 = vand.u32 2147483647, %v954
    %v971 = vand.u32 2147483647, %v955
    %vm972 = vcmp.gt.f32.partialorder %v956, 1e-05
    %vm973 = vcmp.gt.f32.partialorder %v957, 1e-05
    %vm974 = vcmp.gt.f32.partialorder %v958, 1e-05
    %vm975 = vcmp.gt.f32.partialorder %v959, 1e-05
    %vm976 = vcmp.gt.f32.partialorder %v960, 1e-05
    %vm977 = vcmp.gt.f32.partialorder %v961, 1e-05
    %vm978 = vcmp.gt.f32.partialorder %v962, 1e-05
    %vm979 = vcmp.gt.f32.partialorder %v963, 1e-05
    %vm980 = vcmp.gt.f32.partialorder %v964, 1e-05
    %vm981 = vcmp.gt.f32.partialorder %v965, 1e-05
    %vm982 = vcmp.gt.f32.partialorder %v966, 1e-05
    %vm983 = vcmp.gt.f32.partialorder %v967, 1e-05
    %vm984 = vcmp.gt.f32.partialorder %v968, 1e-05
    %vm985 = vcmp.gt.f32.partialorder %v969, 1e-05
    %vm986 = vcmp.gt.f32.partialorder %v970, 1e-05
    %vm987 = vcmp.gt.f32.partialorder %v971, 1e-05
    %v988 = vsel %vm972, %v940, 0.0
    %v989 = vsel %vm973, %v941, 0.0
    %v990 = vsel %vm974, %v942, 0.0
    %v991 = vsel %vm975, %v943, 0.0
    %v992 = vsel %vm976, %v944, 0.0
    %v993 = vsel %vm977, %v945, 0.0
    %v994 = vsel %vm978, %v946, 0.0
    %v995 = vsel %vm979, %v947, 0.0
    %v996 = vsel %vm980, %v948, 0.0
    %v997 = vsel %vm981, %v949, 0.0
    %v998 = vsel %vm982, %v950, 0.0
    %v999 = vsel %vm983, %v951, 0.0
    %v1000 = vsel %vm984, %v952, 0.0
    %v1001 = vsel %vm985, %v953, 0.0
    %v1002 = vsel %vm986, %v954, 0.0
    %v1003 = vsel %vm987, %v955, 0.0
    %1004 = vset.pattern.permute.xlu0 11
    %1005 = vperm.xlu0 %1004, %v73
    %v1006 = vpop.permute.xlu0 %1005
    %v1008 = vmul.f32 %v1006, %v114
    %v1009 = vmul.f32 %v1006, %v118
    %v1010 = vadd.f32 %v1008, %v728
    %v1011 = vadd.f32 %v1009, %v730
    %1012 = vmatprep.subr.mxu0 %v989
    %1013 = vmatpush1.msra.mxu0 %v988
    %1014 = vmatprep.subr.mxu0 %v991
    %1015 = vmatpush1.msra.mxu0 %v990
    %1016 = vmatprep.subr.mxu0 %v993
    %1017 = vmatpush1.msra.mxu0 %v992
    %1018 = vmatprep.subr.mxu0 %v995
    %1019 = vmatpush1.msra.mxu0 %v994
    %1020 = vmatprep.subr.mxu0 %v997
    %1021 = vmatpush1.msra.mxu0 %v996
    %1022 = vmatprep.subr.mxu0 %v999
    %1023 = vmatpush1.msra.mxu0 %v998
    %1024 = vmatprep.subr.mxu0 %v1001
    %1025 = vmatpush1.msra.mxu0 %v1000
    %1026 = vmatprep.subr.mxu0 %v1003
    %1027 = vmatpush1.msra.mxu0 %v1002
    %1028 = vmatprep.subr.mxu0 0.0
    %1029 = vmatpush1.msra.mxu0 0.0
    %1030 = vmatprep.subr.mxu0 0.0
    %1031 = vmatpush1.msra.mxu0 0.0
    %1032 = vmatprep.subr.mxu0 0.0
    %1033 = vmatpush1.msra.mxu0 0.0
    %1034 = vmatprep.subr.mxu0 0.0
    %1035 = vmatpush1.msra.mxu0 0.0
    %1036 = vmatprep.subr.mxu0 0.0
    %1037 = vmatpush1.msra.mxu0 0.0
    %1038 = vmatprep.subr.mxu0 0.0
    %1039 = vmatpush1.msra.mxu0 0.0
    %1040 = vmatprep.subr.mxu0 0.0
    %1041 = vmatpush1.msra.mxu0 0.0
    %1042 = vmatprep.subr.mxu0 0.0
    %1043 = vmatpush1.msra.mxu0 0.0
    %1044 = vmatprep.subr.mxu0 0.0
    %1045 = vmatpush1.msra.mxu0 0.0
    %1046 = vmatprep.subr.mxu0 0.0
    %1047 = vmatpush1.msra.mxu0 0.0
    %1048 = vmatprep.subr.mxu0 0.0
    %1049 = vmatpush1.msra.mxu0 0.0
    %1050 = vmatprep.subr.mxu0 0.0
    %1051 = vmatpush1.msra.mxu0 0.0
    %1052 = vmatprep.subr.mxu0 0.0
    %1053 = vmatpush1.msra.mxu0 0.0
    %1054 = vmatprep.subr.mxu0 0.0
    %1055 = vmatpush1.msra.mxu0 0.0
    %1056 = vmatprep.subr.mxu0 0.0
    %1057 = vmatpush1.msra.mxu0 0.0
    %1058 = vmatprep.subr.mxu0 0.0
    %1059 = vmatpush1.msra.mxu0 0.0
    %1060 = vmatprep.subr.mxu0 0.0
    %1061 = vmatpush1.msra.mxu0 0.0
    %1062 = vmatprep.subr.mxu0 0.0
    %1063 = vmatpush1.msra.mxu0 0.0
    %1064 = vmatprep.subr.mxu0 0.0
    %1065 = vmatpush1.msra.mxu0 0.0
    %1066 = vmatprep.subr.mxu0 0.0
    %1067 = vmatpush1.msra.mxu0 0.0
    %1068 = vmatprep.subr.mxu0 0.0
    %1069 = vmatpush1.msra.mxu0 0.0
    %1070 = vmatprep.subr.mxu0 0.0
    %1071 = vmatpush1.msra.mxu0 0.0
    %1072 = vmatprep.subr.mxu0 0.0
    %1073 = vmatpush1.msra.mxu0 0.0
    %1074 = vmatprep.subr.mxu0 0.0
    %1075 = vmatpush1.msra.mxu0 0.0
    %1076 = vmatprep.mubr.f32.mxu0 0.0
    %1077 = vmatmul.mubr.f32.gmra.mrb[0].mxu0 %v512
    %v1078 = vpop.f32.mrb[0].mxu0
    %v1079 = vadd.f32 0.0, %v1078
    %v1080 = vpop.f32.mrb[0].mxu0
    %v1081 = vadd.f32 0.0, %v1080
    %1082 = vdwg.mxu0
    %v1083 = vadd.f32 %v1010, %v1079
    %v1084 = vadd.f32 %v1011, %v1081
    %1085 = vrot.lane.b32.xlu0 %v1083, 1
    %v1086 = vpop.permute.xlu0 %1085
    %1087 = vrot.lane.b32.xlu0 %v1084, 1
    %v1088 = vpop.permute.xlu0 %1087
    %v1089 = vsel %vm125, %v1086, %v1088
    %v1090 = vsel %vm125, %v1088, %v1086
    %v1091 = vsel %vm65, %v1090, 0.0
    %v1092 = vsel %vm66, %v1089, 0.0
    %v1095 = vrot.slane %v1083, 1
    %v1096 = vrot.slane %v1084, 1
    %v1099 = vadd.f32 %v1091, %v1095
    %v1100 = vadd.f32 %v1092, %v1096
    %v1101 = vrot.slane %v1083, 2
    %v1102 = vrot.slane %v1084, 2
    %1105 = vrot.lane.b32.xlu0 %v1101, 127
    %v1106 = vpop.permute.xlu0 %1105
    %1107 = vrot.lane.b32.xlu0 %v1102, 127
    %v1108 = vpop.permute.xlu0 %1107
    %v1109 = vsel %vm262, %v1106, %v1108
    %v1110 = vsel %vm262, %v1108, %v1106
    %v1111 = vsel %vm69, %v1109, 0.0
    %v1112 = vsel %vm70, %v1110, 0.0
    %v1113 = vadd.f32 %v1099, %v1111
    %v1114 = vadd.f32 %v1100, %v1112
    %1115 = vset.pattern.permute.xlu0 12
    %1116 = vperm.xlu0 %1115, %v73
    %v1117 = vpop.permute.xlu0 %1116
    %v1119 = vadd.f32 %v1113, %v1117
    %v1120 = vadd.f32 %v1114, %v1117
    %v1121 = vand.u32 2147483647, %v1119
    %v1122 = vand.u32 2147483647, %v1120
    %vm1123 = vcmp.gt.f32.partialorder %v1121, 1e-05
    %vm1124 = vcmp.gt.f32.partialorder %v1122, 1e-05
    %v1125 = vsel %vm1123, %v1119, 0.0
    %v1126 = vsel %vm1124, %v1120, 0.0
    %v1128 = vrot.slane %v1126, 7
    %vm1130 = vcmask 1040384
    %v1131 = vsel %vm1130, %v1125, %v1128
    %v1132 = vld [vmem:[#allocation2] sm:$0xff]
    %v1133 = vld [vmem:[#allocation2 + $0x8] sm:$0xff]
    %v1134 = vld [vmem:[#allocation2 + $0x10] sm:$0xff]
    %v1135 = vld [vmem:[#allocation2 + $0x18] sm:$0xff]
    %v1136 = vld [vmem:[#allocation2 + $0x20] sm:$0xff]
    %v1137 = vld [vmem:[#allocation2 + $0x28] sm:$0xff]
    %v1138 = vld [vmem:[#allocation2 + $0x30] sm:$0xff]
    %v1139 = vld [vmem:[#allocation2 + $0x38] sm:$0xff]
    %v1140 = vld [vmem:[#allocation2 + $0x40] sm:$0xff]
    %v1141 = vld [vmem:[#allocation2 + $0x48] sm:$0xff]
    %v1142 = vld [vmem:[#allocation2 + $0x50] sm:$0xff]
    %v1143 = vld [vmem:[#allocation2 + $0x58] sm:$0xff]
    %v1144 = vld [vmem:[#allocation2 + $0x60] sm:$0xff]
    %v1145 = vld [vmem:[#allocation2 + $0x68] sm:$0xff]
    %v1146 = vld [vmem:[#allocation2 + $0x70] sm:$0xff]
    %v1147 = vld [vmem:[#allocation2 + $0x78] sm:$0xff]
    %v1148 = vlaneseq
    %v1149 = vshrl.u32 %v1148, 7
    %v1150 = vsub.s32 0, %v1149
    %v1151 = vrot.slane %v108, %v1150
    %1152 = vmatprep.subr.mxu0 0.0
    %1153 = vmatpush1.msra.mxu0 %v1132
    %1154 = vmatprep.subr.mxu0 0.0
    %1155 = vmatpush1.msra.mxu0 %v1133
    %1156 = vmatprep.subr.mxu0 0.0
    %1157 = vmatpush1.msra.mxu0 %v1134
    %1158 = vmatprep.subr.mxu0 0.0
    %1159 = vmatpush1.msra.mxu0 %v1135
    %1160 = vmatprep.subr.mxu0 0.0
    %1161 = vmatpush1.msra.mxu0 %v1136
    %1162 = vmatprep.subr.mxu0 0.0
    %1163 = vmatpush1.msra.mxu0 %v1137
    %1164 = vmatprep.subr.mxu0 0.0
    %1165 = vmatpush1.msra.mxu0 %v1138
    %1166 = vmatprep.subr.mxu0 0.0
    %1167 = vmatpush1.msra.mxu0 %v1139
    %1168 = vmatprep.subr.mxu0 0.0
    %1169 = vmatpush1.msra.mxu0 %v1140
    %1170 = vmatprep.subr.mxu0 0.0
    %1171 = vmatpush1.msra.mxu0 %v1141
    %1172 = vmatprep.subr.mxu0 0.0
    %1173 = vmatpush1.msra.mxu0 %v1142
    %1174 = vmatprep.subr.mxu0 0.0
    %1175 = vmatpush1.msra.mxu0 %v1143
    %1176 = vmatprep.subr.mxu0 0.0
    %1177 = vmatpush1.msra.mxu0 %v1144
    %1178 = vmatprep.subr.mxu0 0.0
    %1179 = vmatpush1.msra.mxu0 %v1145
    %1180 = vmatprep.subr.mxu0 0.0
    %1181 = vmatpush1.msra.mxu0 %v1146
    %1182 = vmatprep.subr.mxu0 0.0
    %1183 = vmatpush1.msra.mxu0 %v1147
    %1184 = vmatprep.subr.mxu0 0.0
    %1185 = vmatpush1.msra.mxu0 0.0
    %1186 = vmatprep.subr.mxu0 0.0
    %1187 = vmatpush1.msra.mxu0 0.0
    %1188 = vmatprep.subr.mxu0 0.0
    %1189 = vmatpush1.msra.mxu0 0.0
    %1190 = vmatprep.subr.mxu0 0.0
    %1191 = vmatpush1.msra.mxu0 0.0
    %1192 = vmatprep.subr.mxu0 0.0
    %1193 = vmatpush1.msra.mxu0 0.0
    %1194 = vmatprep.subr.mxu0 0.0
    %1195 = vmatpush1.msra.mxu0 0.0
    %1196 = vmatprep.subr.mxu0 0.0
    %1197 = vmatpush1.msra.mxu0 0.0
    %1198 = vmatprep.subr.mxu0 0.0
    %1199 = vmatpush1.msra.mxu0 0.0
    %1200 = vmatprep.subr.mxu0 0.0
    %1201 = vmatpush1.msra.mxu0 0.0
    %1202 = vmatprep.subr.mxu0 0.0
    %1203 = vmatpush1.msra.mxu0 0.0
    %1204 = vmatprep.subr.mxu0 0.0
    %1205 = vmatpush1.msra.mxu0 0.0
    %1206 = vmatprep.subr.mxu0 0.0
    %1207 = vmatpush1.msra.mxu0 0.0
    %1208 = vmatprep.subr.mxu0 0.0
    %1209 = vmatpush1.msra.mxu0 0.0
    %1210 = vmatprep.subr.mxu0 0.0
    %1211 = vmatpush1.msra.mxu0 0.0
    %1212 = vmatprep.subr.mxu0 0.0
    %1213 = vmatpush1.msra.mxu0 0.0
    %1214 = vmatprep.subr.mxu0 0.0
    %1215 = vmatpush1.msra.mxu0 0.0
    %1216 = vmatprep.mubr.f32.mxu0 0.0
    %1217 = vmatmul.mubr.f32.gmra.mrb[0].mxu0 %v1131
    %v1218 = vpop.f32.mrb[0].mxu0
    %v1219 = vadd.f32 %v1151, %v1218
    %v1220 = vpop.f32.mrb[0].mxu0
    %1221 = vdwg.mxu0
    %v1222 = vand.u32 2147483647, %v1219
    %vm1223 = vcmp.gt.f32.partialorder %v1222, 1e-08
    %v1224 = vsel %vm1223, %v1219, 0.0
    %s1225 = scalar_lea.vmem [#allocation2], 128
    %v1226 = vld [vmem:[%s1225] sm:$0xff]
    %v1227 = vld [vmem:[%s1225 + $0x8] sm:$0xff]
    %v1228 = vld [vmem:[%s1225 + $0x10] sm:$0xff]
    %v1229 = vld [vmem:[%s1225 + $0x18] sm:$0xff]
    %v1230 = vld [vmem:[%s1225 + $0x20] sm:$0xff]
    %v1231 = vld [vmem:[%s1225 + $0x28] sm:$0xff]
    %v1232 = vld [vmem:[%s1225 + $0x30] sm:$0xff]
    %v1233 = vld [vmem:[%s1225 + $0x38] sm:$0xff]
    %v1234 = vld [vmem:[%s1225 + $0x40] sm:$0xff]
    %v1235 = vld [vmem:[%s1225 + $0x48] sm:$0xff]
    %v1236 = vld [vmem:[%s1225 + $0x50] sm:$0xff]
    %v1237 = vld [vmem:[%s1225 + $0x58] sm:$0xff]
    %v1238 = vld [vmem:[%s1225 + $0x60] sm:$0xff]
    %v1239 = vld [vmem:[%s1225 + $0x68] sm:$0xff]
    %v1240 = vld [vmem:[%s1225 + $0x70] sm:$0xff]
    %v1241 = vld [vmem:[%s1225 + $0x78] sm:$0xff]
    %v1242 = vlaneseq
    %v1243 = vshrl.u32 %v1242, 7
    %v1244 = vsub.s32 1, %v1243
    %v1245 = vrot.slane %v108, %v1244
    %1246 = vmatprep.subr.mxu0 0.0
    %1247 = vmatpush1.msra.mxu0 %v1226
    %1248 = vmatprep.subr.mxu0 0.0
    %1249 = vmatpush1.msra.mxu0 %v1227
    %1250 = vmatprep.subr.mxu0 0.0
    %1251 = vmatpush1.msra.mxu0 %v1228
    %1252 = vmatprep.subr.mxu0 0.0
    %1253 = vmatpush1.msra.mxu0 %v1229
    %1254 = vmatprep.subr.mxu0 0.0
    %1255 = vmatpush1.msra.mxu0 %v1230
    %1256 = vmatprep.subr.mxu0 0.0
    %1257 = vmatpush1.msra.mxu0 %v1231
    %1258 = vmatprep.subr.mxu0 0.0
    %1259 = vmatpush1.msra.mxu0 %v1232
    %1260 = vmatprep.subr.mxu0 0.0
    %1261 = vmatpush1.msra.mxu0 %v1233
    %1262 = vmatprep.subr.mxu0 0.0
    %1263 = vmatpush1.msra.mxu0 %v1234
    %1264 = vmatprep.subr.mxu0 0.0
    %1265 = vmatpush1.msra.mxu0 %v1235
    %1266 = vmatprep.subr.mxu0 0.0
    %1267 = vmatpush1.msra.mxu0 %v1236
    %1268 = vmatprep.subr.mxu0 0.0
    %1269 = vmatpush1.msra.mxu0 %v1237
    %1270 = vmatprep.subr.mxu0 0.0
    %1271 = vmatpush1.msra.mxu0 %v1238
    %1272 = vmatprep.subr.mxu0 0.0
    %1273 = vmatpush1.msra.mxu0 %v1239
    %1274 = vmatprep.subr.mxu0 0.0
    %1275 = vmatpush1.msra.mxu0 %v1240
    %1276 = vmatprep.subr.mxu0 0.0
    %1277 = vmatpush1.msra.mxu0 %v1241
    %1278 = vmatprep.subr.mxu0 0.0
    %1279 = vmatpush1.msra.mxu0 0.0
    %1280 = vmatprep.subr.mxu0 0.0
    %1281 = vmatpush1.msra.mxu0 0.0
    %1282 = vmatprep.subr.mxu0 0.0
    %1283 = vmatpush1.msra.mxu0 0.0
    %1284 = vmatprep.subr.mxu0 0.0
    %1285 = vmatpush1.msra.mxu0 0.0
    %1286 = vmatprep.subr.mxu0 0.0
    %1287 = vmatpush1.msra.mxu0 0.0
    %1288 = vmatprep.subr.mxu0 0.0
    %1289 = vmatpush1.msra.mxu0 0.0
    %1290 = vmatprep.subr.mxu0 0.0
    %1291 = vmatpush1.msra.mxu0 0.0
    %1292 = vmatprep.subr.mxu0 0.0
    %1293 = vmatpush1.msra.mxu0 0.0
    %1294 = vmatprep.subr.mxu0 0.0
    %1295 = vmatpush1.msra.mxu0 0.0
    %1296 = vmatprep.subr.mxu0 0.0
    %1297 = vmatpush1.msra.mxu0 0.0
    %1298 = vmatprep.subr.mxu0 0.0
    %1299 = vmatpush1.msra.mxu0 0.0
    %1300 = vmatprep.subr.mxu0 0.0
    %1301 = vmatpush1.msra.mxu0 0.0
    %1302 = vmatprep.subr.mxu0 0.0
    %1303 = vmatpush1.msra.mxu0 0.0
    %1304 = vmatprep.subr.mxu0 0.0
    %1305 = vmatpush1.msra.mxu0 0.0
    %1306 = vmatprep.subr.mxu0 0.0
    %1307 = vmatpush1.msra.mxu0 0.0
    %1308 = vmatprep.subr.mxu0 0.0
    %1309 = vmatpush1.msra.mxu0 0.0
    %1310 = vmatprep.mubr.f32.mxu0 0.0
    %1311 = vmatmul.mubr.f32.gmra.mrb[0].mxu0 %v1224
    %v1312 = vpop.f32.mrb[0].mxu0
    %v1313 = vadd.f32 %v1245, %v1312
    %v1314 = vpop.f32.mrb[0].mxu0
    %1315 = vdwg.mxu0
    %v1316 = vand.u32 2147483647, %v1313
    %vm1317 = vcmp.gt.f32.partialorder %v1316, 1e-08
    %v1318 = vsel %vm1317, %v1313, 0.0
    %s1319 = scalar_lea.vmem [#allocation2], 256
    %v1320 = vld [vmem:[%s1319] sm:$0xff]
    %v1321 = vld [vmem:[%s1319 + $0x8] sm:$0xff]
    %v1322 = vld [vmem:[%s1319 + $0x10] sm:$0xff]
    %v1323 = vld [vmem:[%s1319 + $0x18] sm:$0xff]
    %v1324 = vld [vmem:[%s1319 + $0x20] sm:$0xff]
    %v1325 = vld [vmem:[%s1319 + $0x28] sm:$0xff]
    %v1326 = vld [vmem:[%s1319 + $0x30] sm:$0xff]
    %v1327 = vld [vmem:[%s1319 + $0x38] sm:$0xff]
    %v1328 = vld [vmem:[%s1319 + $0x40] sm:$0xff]
    %v1329 = vld [vmem:[%s1319 + $0x48] sm:$0xff]
    %v1330 = vld [vmem:[%s1319 + $0x50] sm:$0xff]
    %v1331 = vld [vmem:[%s1319 + $0x58] sm:$0xff]
    %v1332 = vld [vmem:[%s1319 + $0x60] sm:$0xff]
    %v1333 = vld [vmem:[%s1319 + $0x68] sm:$0xff]
    %v1334 = vld [vmem:[%s1319 + $0x70] sm:$0xff]
    %v1335 = vld [vmem:[%s1319 + $0x78] sm:$0xff]
    %1336 = vmatprep.subr.mxu0 0.0
    %1337 = vmatpush1.msra.mxu0 %v1320
    %1338 = vmatprep.subr.mxu0 0.0
    %1339 = vmatpush1.msra.mxu0 %v1321
    %1340 = vmatprep.subr.mxu0 0.0
    %1341 = vmatpush1.msra.mxu0 %v1322
    %1342 = vmatprep.subr.mxu0 0.0
    %1343 = vmatpush1.msra.mxu0 %v1323
    %1344 = vmatprep.subr.mxu0 0.0
    %1345 = vmatpush1.msra.mxu0 %v1324
    %1346 = vmatprep.subr.mxu0 0.0
    %1347 = vmatpush1.msra.mxu0 %v1325
    %1348 = vmatprep.subr.mxu0 0.0
    %1349 = vmatpush1.msra.mxu0 %v1326
    %1350 = vmatprep.subr.mxu0 0.0
    %1351 = vmatpush1.msra.mxu0 %v1327
    %1352 = vmatprep.subr.mxu0 0.0
    %1353 = vmatpush1.msra.mxu0 %v1328
    %1354 = vmatprep.subr.mxu0 0.0
    %1355 = vmatpush1.msra.mxu0 %v1329
    %1356 = vmatprep.subr.mxu0 0.0
    %1357 = vmatpush1.msra.mxu0 %v1330
    %1358 = vmatprep.subr.mxu0 0.0
    %1359 = vmatpush1.msra.mxu0 %v1331
    %1360 = vmatprep.subr.mxu0 0.0
    %1361 = vmatpush1.msra.mxu0 %v1332
    %1362 = vmatprep.subr.mxu0 0.0
    %1363 = vmatpush1.msra.mxu0 %v1333
    %1364 = vmatprep.subr.mxu0 0.0
    %1365 = vmatpush1.msra.mxu0 %v1334
    %1366 = vmatprep.subr.mxu0 0.0
    %1367 = vmatpush1.msra.mxu0 %v1335
    %1368 = vmatprep.subr.mxu0 0.0
    %1369 = vmatpush1.msra.mxu0 0.0
    %1370 = vmatprep.subr.mxu0 0.0
    %1371 = vmatpush1.msra.mxu0 0.0
    %1372 = vmatprep.subr.mxu0 0.0
    %1373 = vmatpush1.msra.mxu0 0.0
    %1374 = vmatprep.subr.mxu0 0.0
    %1375 = vmatpush1.msra.mxu0 0.0
    %1376 = vmatprep.subr.mxu0 0.0
    %1377 = vmatpush1.msra.mxu0 0.0
    %1378 = vmatprep.subr.mxu0 0.0
    %1379 = vmatpush1.msra.mxu0 0.0
    %1380 = vmatprep.subr.mxu0 0.0
    %1381 = vmatpush1.msra.mxu0 0.0
    %1382 = vmatprep.subr.mxu0 0.0
    %1383 = vmatpush1.msra.mxu0 0.0
    %1384 = vmatprep.subr.mxu0 0.0
    %1385 = vmatpush1.msra.mxu0 0.0
    %1386 = vmatprep.subr.mxu0 0.0
    %1387 = vmatpush1.msra.mxu0 0.0
    %1388 = vmatprep.subr.mxu0 0.0
    %1389 = vmatpush1.msra.mxu0 0.0
    %1390 = vmatprep.subr.mxu0 0.0
    %1391 = vmatpush1.msra.mxu0 0.0
    %1392 = vmatprep.subr.mxu0 0.0
    %1393 = vmatpush1.msra.mxu0 0.0
    %1394 = vmatprep.subr.mxu0 0.0
    %1395 = vmatpush1.msra.mxu0 0.0
    %1396 = vmatprep.subr.mxu0 0.0
    %1397 = vmatpush1.msra.mxu0 0.0
    %1398 = vmatprep.subr.mxu0 0.0
    %1399 = vmatpush1.msra.mxu0 0.0
    %1400 = vmatprep.mubr.f32.mxu0 0.0
    %1401 = vmatmul.mubr.f32.gmra.mrb[0].mxu0 %v1318
    %v1402 = vpop.f32.mrb[0].mxu0
    %v1403 = vadd.f32 0.0, %v1402
    %v1404 = vpop.f32.mrb[0].mxu0
    %1405 = vdwg.mxu0
    %v1407 = vrot.slane %v1403, 1
    %1409 = vrot.lane.b32.xlu0 %v1403, 2
    %v1410 = vpop.permute.xlu0 %1409
    %1411 = vrot.lane.b32.xlu0 %v1407, 2
    %v1412 = vpop.permute.xlu0 %1411
    %vm1413 = vcmp.lt.s32.totalorder %v39, 2
    %v1414 = vsel %vm1413, %v1410, %v1412
    %v1415 = vsel %vm1413, %v1412, %v1410
    %v1416 = vsel %vm67, %v1415, 0.0
    %v1417 = vsel %vm68, %v1414, 0.0
    %1418 = vset.pattern.permute.xlu0 5
    %1419 = vperm.xlu0 %1418, %v73
    %v1420 = vpop.permute.xlu0 %1419
    %1422 = vset.pattern.permute.xlu0 5
    %1423 = vperm.xlu0 %1422, %v74
    %v1424 = vpop.permute.xlu0 %1423
    %v1426 = vlaneseq
    %v1427 = vshrl.u32 %v1426, 7
    %v1428 = vsub.s32 0, %v1427
    %v1429 = vrot.slane %v1416, %v1428
    %v1430 = vlaneseq
    %v1431 = vshrl.u32 %v1430, 7
    %v1432 = vsub.s32 0, %v1431
    %v1433 = vrot.slane %v1417, %v1432
    %v1434 = vmul.f32 %v1420, %v1429
    %v1435 = vmul.f32 %v1420, %v1433
    %v1436 = vmul.f32 %v1424, %v1429
    %v1437 = vmul.f32 %v1424, %v1433
    %1438 = vrot.lane.b32.xlu0 %v1403, 1
    %v1439 = vpop.permute.xlu0 %1438
    %1440 = vrot.lane.b32.xlu0 %v1407, 1
    %v1441 = vpop.permute.xlu0 %1440
    %v1442 = vsel %vm125, %v1439, %v1441
    %v1443 = vsel %vm125, %v1441, %v1439
    %v1444 = vsel %vm65, %v1443, 0.0
    %v1445 = vsel %vm66, %v1442, 0.0
    %1446 = vset.pattern.permute.xlu0 6
    %1447 = vperm.xlu0 %1446, %v73
    %v1448 = vpop.permute.xlu0 %1447
    %1450 = vset.pattern.permute.xlu0 6
    %1451 = vperm.xlu0 %1450, %v74
    %v1452 = vpop.permute.xlu0 %1451
    %v1454 = vlaneseq
    %v1455 = vshrl.u32 %v1454, 7
    %v1456 = vsub.s32 0, %v1455
    %v1457 = vrot.slane %v1444, %v1456
    %v1458 = vlaneseq
    %v1459 = vshrl.u32 %v1458, 7
    %v1460 = vsub.s32 0, %v1459
    %v1461 = vrot.slane %v1445, %v1460
    %v1462 = vmul.f32 %v1448, %v1457
    %v1463 = vmul.f32 %v1448, %v1461
    %v1464 = vmul.f32 %v1452, %v1457
    %v1465 = vmul.f32 %v1452, %v1461
    %v1466 = vadd.f32 %v1434, %v1462
    %v1467 = vadd.f32 %v1435, %v1463
    %v1468 = vadd.f32 %v1436, %v1464
    %v1469 = vadd.f32 %v1437, %v1465
    %1470 = vset.pattern.permute.xlu0 7
    %1471 = vperm.xlu0 %1470, %v73
    %v1472 = vpop.permute.xlu0 %1471
    %1474 = vset.pattern.permute.xlu0 7
    %1475 = vperm.xlu0 %1474, %v74
    %v1476 = vpop.permute.xlu0 %1475
    %v1478 = vlaneseq
    %v1479 = vshrl.u32 %v1478, 7
    %v1480 = vsub.s32 0, %v1479
    %v1481 = vrot.slane %v1403, %v1480
    %v1482 = vlaneseq
    %v1483 = vshrl.u32 %v1482, 7
    %v1484 = vsub.s32 0, %v1483
    %v1485 = vrot.slane %v1407, %v1484
    %v1486 = vmul.f32 %v1472, %v1481
    %v1487 = vmul.f32 %v1472, %v1485
    %v1488 = vmul.f32 %v1476, %v1481
    %v1489 = vmul.f32 %v1476, %v1485
    %v1490 = vadd.f32 %v1466, %v1486
    %v1491 = vadd.f32 %v1467, %v1487
    %v1492 = vadd.f32 %v1468, %v1488
    %v1493 = vadd.f32 %v1469, %v1489
    %1494 = vrot.lane.b32.xlu0 %v1403, 127
    %v1495 = vpop.permute.xlu0 %1494
    %1496 = vrot.lane.b32.xlu0 %v1407, 127
    %v1497 = vpop.permute.xlu0 %1496
    %v1498 = vsel %vm262, %v1495, %v1497
    %v1499 = vsel %vm262, %v1497, %v1495
    %v1500 = vsel %vm69, %v1498, 0.0
    %v1501 = vsel %vm70, %v1499, 0.0
    %1502 = vset.pattern.permute.xlu0 8
    %1503 = vperm.xlu0 %1502, %v73
    %v1504 = vpop.permute.xlu0 %1503
    %1506 = vset.pattern.permute.xlu0 8
    %1507 = vperm.xlu0 %1506, %v74
    %v1508 = vpop.permute.xlu0 %1507
    %v1510 = vlaneseq
    %v1511 = vshrl.u32 %v1510, 7
    %v1512 = vsub.s32 0, %v1511
    %v1513 = vrot.slane %v1500, %v1512
    %v1514 = vlaneseq
    %v1515 = vshrl.u32 %v1514, 7
    %v1516 = vsub.s32 0, %v1515
    %v1517 = vrot.slane %v1501, %v1516
    %v1518 = vmul.f32 %v1504, %v1513
    %v1519 = vmul.f32 %v1504, %v1517
    %v1520 = vmul.f32 %v1508, %v1513
    %v1521 = vmul.f32 %v1508, %v1517
    %v1522 = vadd.f32 %v1490, %v1518
    %v1523 = vadd.f32 %v1491, %v1519
    %v1524 = vadd.f32 %v1492, %v1520
    %v1525 = vadd.f32 %v1493, %v1521
    %1526 = vrot.lane.b32.xlu0 %v1403, 126
    %v1527 = vpop.permute.xlu0 %1526
    %1528 = vrot.lane.b32.xlu0 %v1407, 126
    %v1529 = vpop.permute.xlu0 %1528
    %vm1530 = vcmp.lt.s32.totalorder %v39, 126
    %v1531 = vsel %vm1530, %v1527, %v1529
    %v1532 = vsel %vm1530, %v1529, %v1527
    %v1533 = vsel %vm71, %v1531, 0.0
    %v1534 = vsel %vm72, %v1532, 0.0
    %1535 = vset.pattern.permute.xlu0 9
    %1536 = vperm.xlu0 %1535, %v73
    %v1537 = vpop.permute.xlu0 %1536
    %1539 = vset.pattern.permute.xlu0 9
    %1540 = vperm.xlu0 %1539, %v74
    %v1541 = vpop.permute.xlu0 %1540
    %v1543 = vlaneseq
    %v1544 = vshrl.u32 %v1543, 7
    %v1545 = vsub.s32 0, %v1544
    %v1546 = vrot.slane %v1533, %v1545
    %v1547 = vlaneseq
    %v1548 = vshrl.u32 %v1547, 7
    %v1549 = vsub.s32 0, %v1548
    %v1550 = vrot.slane %v1534, %v1549
    %v1551 = vmul.f32 %v1537, %v1546
    %v1552 = vmul.f32 %v1537, %v1550
    %v1553 = vmul.f32 %v1541, %v1546
    %v1554 = vmul.f32 %v1541, %v1550
    %v1555 = vadd.f32 %v1522, %v1551
    %v1556 = vadd.f32 %v1523, %v1552
    %v1557 = vadd.f32 %v1524, %v1553
    %v1558 = vadd.f32 %v1525, %v1554
    %1559 = vset.pattern.permute.xlu0 10
    %1560 = vperm.xlu0 %1559, %v73
    %v1561 = vpop.permute.xlu0 %1560
    %1563 = vset.pattern.permute.xlu0 10
    %1564 = vperm.xlu0 %1563, %v74
    %v1565 = vpop.permute.xlu0 %1564
    %v1567 = vadd.f32 %v1555, %v1561
    %v1568 = vadd.f32 %v1556, %v1561
    %v1569 = vadd.f32 %v1557, %v1565
    %v1570 = vadd.f32 %v1558, %v1565
    %v1571 = vtanh.pop %v1567
    %v1572 = vtanh.pop %v1568
    %v1573 = vtanh.pop %v1569
    %v1574 = vtanh.pop %v1570
    %vm1575 = vcmask 130048
    %v1576 = vsel %vm1575, %v107, 0
    %1578 = vmatprep.subr.mxu0 %v1572
    %1579 = vmatpush1.msra.mxu0 %v1571
    %1580 = vmatprep.subr.mxu0 %v1574
    %1581 = vmatpush1.msra.mxu0 %v1573
    %1582 = vmatprep.subr.mxu0 0.0
    %1583 = vmatpush1.msra.mxu0 0.0
    %1584 = vmatprep.subr.mxu0 0.0
    %1585 = vmatpush1.msra.mxu0 0.0
    %1586 = vmatprep.subr.mxu0 0.0
    %1587 = vmatpush1.msra.mxu0 0.0
    %1588 = vmatprep.subr.mxu0 0.0
    %1589 = vmatpush1.msra.mxu0 0.0
    %1590 = vmatprep.subr.mxu0 0.0
    %1591 = vmatpush1.msra.mxu0 0.0
    %1592 = vmatprep.subr.mxu0 0.0
    %1593 = vmatpush1.msra.mxu0 0.0
    %1594 = vmatprep.subr.mxu0 0.0
    %1595 = vmatpush1.msra.mxu0 0.0
    %1596 = vmatprep.subr.mxu0 0.0
    %1597 = vmatpush1.msra.mxu0 0.0
    %1598 = vmatprep.subr.mxu0 0.0
    %1599 = vmatpush1.msra.mxu0 0.0
    %1600 = vmatprep.subr.mxu0 0.0
    %1601 = vmatpush1.msra.mxu0 0.0
    %1602 = vmatprep.subr.mxu0 0.0
    %1603 = vmatpush1.msra.mxu0 0.0
    %1604 = vmatprep.subr.mxu0 0.0
    %1605 = vmatpush1.msra.mxu0 0.0
    %1606 = vmatprep.subr.mxu0 0.0
    %1607 = vmatpush1.msra.mxu0 0.0
    %1608 = vmatprep.subr.mxu0 0.0
    %1609 = vmatpush1.msra.mxu0 0.0
    %1610 = vmatprep.subr.mxu0 0.0
    %1611 = vmatpush1.msra.mxu0 0.0
    %1612 = vmatprep.subr.mxu0 0.0
    %1613 = vmatpush1.msra.mxu0 0.0
    %1614 = vmatprep.subr.mxu0 0.0
    %1615 = vmatpush1.msra.mxu0 0.0
    %1616 = vmatprep.subr.mxu0 0.0
    %1617 = vmatpush1.msra.mxu0 0.0
    %1618 = vmatprep.subr.mxu0 0.0
    %1619 = vmatpush1.msra.mxu0 0.0
    %1620 = vmatprep.subr.mxu0 0.0
    %1621 = vmatpush1.msra.mxu0 0.0
    %1622 = vmatprep.subr.mxu0 0.0
    %1623 = vmatpush1.msra.mxu0 0.0
    %1624 = vmatprep.subr.mxu0 0.0
    %1625 = vmatpush1.msra.mxu0 0.0
    %1626 = vmatprep.subr.mxu0 0.0
    %1627 = vmatpush1.msra.mxu0 0.0
    %1628 = vmatprep.subr.mxu0 0.0
    %1629 = vmatpush1.msra.mxu0 0.0
    %1630 = vmatprep.subr.mxu0 0.0
    %1631 = vmatpush1.msra.mxu0 0.0
    %1632 = vmatprep.subr.mxu0 0.0
    %1633 = vmatpush1.msra.mxu0 0.0
    %1634 = vmatprep.subr.mxu0 0.0
    %1635 = vmatpush1.msra.mxu0 0.0
    %1636 = vmatprep.subr.mxu0 0.0
    %1637 = vmatpush1.msra.mxu0 0.0
    %1638 = vmatprep.subr.mxu0 0.0
    %1639 = vmatpush1.msra.mxu0 0.0
    %1640 = vmatprep.subr.mxu0 0.0
    %1641 = vmatpush1.msra.mxu0 0.0
    %1642 = vmatprep.mubr.f32.mxu0 0.0
    %1643 = vmatmul.mubr.f32.gmra.mrb[0].mxu0 %v1576
    %v1644 = vpop.f32.mrb[0].mxu0
    %v1645 = vadd.f32 0.0, %v1644
    %v1646 = vpop.f32.mrb[0].mxu0
    %v1647 = vadd.f32 0.0, %v1646
    %1648 = vdwg.mxu0
    %1649 = vrot.lane.b32.xlu0 %v1645, 2
    %v1650 = vpop.permute.xlu0 %1649
    %1651 = vrot.lane.b32.xlu0 %v1647, 2
    %v1652 = vpop.permute.xlu0 %1651
    %v1653 = vsel %vm1413, %v1650, %v1652
    %v1654 = vsel %vm1413, %v1652, %v1650
    %v1655 = vsel %vm67, %v1654, 0.0
    %v1656 = vsel %vm68, %v1653, 0.0
    %v1659 = vrot.slane %v1645, 1
    %v1660 = vrot.slane %v1647, 1
    %1663 = vrot.lane.b32.xlu0 %v1659, 1
    %v1664 = vpop.permute.xlu0 %1663
    %1665 = vrot.lane.b32.xlu0 %v1660, 1
    %v1666 = vpop.permute.xlu0 %1665
    %v1667 = vsel %vm125, %v1664, %v1666
    %v1668 = vsel %vm125, %v1666, %v1664
    %v1669 = vsel %vm65, %v1668, 0.0
    %v1670 = vsel %vm66, %v1667, 0.0
    %v1671 = vadd.f32 %v1655, %v1669
    %v1672 = vadd.f32 %v1656, %v1670
    %v1673 = vrot.slane %v1645, 2
    %v1674 = vrot.slane %v1647, 2
    %v1677 = vadd.f32 %v1671, %v1673
    %v1678 = vadd.f32 %v1672, %v1674
    %v1679 = vrot.slane %v1645, 3
    %v1680 = vrot.slane %v1647, 3
    %1683 = vrot.lane.b32.xlu0 %v1679, 127
    %v1684 = vpop.permute.xlu0 %1683
    %1685 = vrot.lane.b32.xlu0 %v1680, 127
    %v1686 = vpop.permute.xlu0 %1685
    %v1687 = vsel %vm262, %v1684, %v1686
    %v1688 = vsel %vm262, %v1686, %v1684
    %v1689 = vsel %vm69, %v1687, 0.0
    %v1690 = vsel %vm70, %v1688, 0.0
    %v1691 = vadd.f32 %v1677, %v1689
    %v1692 = vadd.f32 %v1678, %v1690
    %v1693 = vrot.slane %v1645, 4
    %v1694 = vrot.slane %v1647, 4
    %1697 = vrot.lane.b32.xlu0 %v1693, 126
    %v1698 = vpop.permute.xlu0 %1697
    %1699 = vrot.lane.b32.xlu0 %v1694, 126
    %v1700 = vpop.permute.xlu0 %1699
    %v1701 = vsel %vm1530, %v1698, %v1700
    %v1702 = vsel %vm1530, %v1700, %v1698
    %v1703 = vsel %vm71, %v1701, 0.0
    %v1704 = vsel %vm72, %v1702, 0.0
    %v1705 = vadd.f32 %v1691, %v1703
    %v1706 = vadd.f32 %v1692, %v1704
    %v1707 = vrot.slane %v1117, 1
    %v1709 = vadd.f32 %v1705, %v1707
    %v1710 = vadd.f32 %v1706, %v1707
    %v1711 = vtanh.pop %v1709
    %v1712 = vtanh.pop %v1710
    %v1714 = vrot.slane %v1712, 7
    %v1716 = vsel %vm1130, %v1711, %v1714
    %s1717 = scalar_lea.vmem [#allocation2], 384
    %v1718 = vld [vmem:[%s1717] sm:$0xff]
    %v1719 = vld [vmem:[%s1717 + $0x8] sm:$0xff]
    %v1720 = vld [vmem:[%s1717 + $0x10] sm:$0xff]
    %v1721 = vld [vmem:[%s1717 + $0x18] sm:$0xff]
    %v1722 = vld [vmem:[%s1717 + $0x20] sm:$0xff]
    %v1723 = vld [vmem:[%s1717 + $0x28] sm:$0xff]
    %v1724 = vld [vmem:[%s1717 + $0x30] sm:$0xff]
    %v1725 = vld [vmem:[%s1717 + $0x38] sm:$0xff]
    %v1726 = vld [vmem:[%s1717 + $0x40] sm:$0xff]
    %v1727 = vld [vmem:[%s1717 + $0x48] sm:$0xff]
    %v1728 = vld [vmem:[%s1717 + $0x50] sm:$0xff]
    %v1729 = vld [vmem:[%s1717 + $0x58] sm:$0xff]
    %v1730 = vld [vmem:[%s1717 + $0x60] sm:$0xff]
    %v1731 = vld [vmem:[%s1717 + $0x68] sm:$0xff]
    %v1732 = vld [vmem:[%s1717 + $0x70] sm:$0xff]
    %v1733 = vld [vmem:[%s1717 + $0x78] sm:$0xff]
    %v1734 = vlaneseq
    %v1735 = vshrl.u32 %v1734, 7
    %v1736 = vsub.s32 2, %v1735
    %v1737 = vrot.slane %v108, %v1736
    %1738 = vmatprep.subr.mxu0 0.0
    %1739 = vmatpush1.msra.mxu0 %v1718
    %1740 = vmatprep.subr.mxu0 0.0
    %1741 = vmatpush1.msra.mxu0 %v1719
    %1742 = vmatprep.subr.mxu0 0.0
    %1743 = vmatpush1.msra.mxu0 %v1720
    %1744 = vmatprep.subr.mxu0 0.0
    %1745 = vmatpush1.msra.mxu0 %v1721
    %1746 = vmatprep.subr.mxu0 0.0
    %1747 = vmatpush1.msra.mxu0 %v1722
    %1748 = vmatprep.subr.mxu0 0.0
    %1749 = vmatpush1.msra.mxu0 %v1723
    %1750 = vmatprep.subr.mxu0 0.0
    %1751 = vmatpush1.msra.mxu0 %v1724
    %1752 = vmatprep.subr.mxu0 0.0
    %1753 = vmatpush1.msra.mxu0 %v1725
    %1754 = vmatprep.subr.mxu0 0.0
    %1755 = vmatpush1.msra.mxu0 %v1726
    %1756 = vmatprep.subr.mxu0 0.0
    %1757 = vmatpush1.msra.mxu0 %v1727
    %1758 = vmatprep.subr.mxu0 0.0
    %1759 = vmatpush1.msra.mxu0 %v1728
    %1760 = vmatprep.subr.mxu0 0.0
    %1761 = vmatpush1.msra.mxu0 %v1729
    %1762 = vmatprep.subr.mxu0 0.0
    %1763 = vmatpush1.msra.mxu0 %v1730
    %1764 = vmatprep.subr.mxu0 0.0
    %1765 = vmatpush1.msra.mxu0 %v1731
    %1766 = vmatprep.subr.mxu0 0.0
    %1767 = vmatpush1.msra.mxu0 %v1732
    %1768 = vmatprep.subr.mxu0 0.0
    %1769 = vmatpush1.msra.mxu0 %v1733
    %1770 = vmatprep.subr.mxu0 0.0
    %1771 = vmatpush1.msra.mxu0 0.0
    %1772 = vmatprep.subr.mxu0 0.0
    %1773 = vmatpush1.msra.mxu0 0.0
    %1774 = vmatprep.subr.mxu0 0.0
    %1775 = vmatpush1.msra.mxu0 0.0
    %1776 = vmatprep.subr.mxu0 0.0
    %1777 = vmatpush1.msra.mxu0 0.0
    %1778 = vmatprep.subr.mxu0 0.0
    %1779 = vmatpush1.msra.mxu0 0.0
    %1780 = vmatprep.subr.mxu0 0.0
    %1781 = vmatpush1.msra.mxu0 0.0
    %1782 = vmatprep.subr.mxu0 0.0
    %1783 = vmatpush1.msra.mxu0 0.0
    %1784 = vmatprep.subr.mxu0 0.0
    %1785 = vmatpush1.msra.mxu0 0.0
    %1786 = vmatprep.subr.mxu0 0.0
    %1787 = vmatpush1.msra.mxu0 0.0
    %1788 = vmatprep.subr.mxu0 0.0
    %1789 = vmatpush1.msra.mxu0 0.0
    %1790 = vmatprep.subr.mxu0 0.0
    %1791 = vmatpush1.msra.mxu0 0.0
    %1792 = vmatprep.subr.mxu0 0.0
    %1793 = vmatpush1.msra.mxu0 0.0
    %1794 = vmatprep.subr.mxu0 0.0
    %1795 = vmatpush1.msra.mxu0 0.0
    %1796 = vmatprep.subr.mxu0 0.0
    %1797 = vmatpush1.msra.mxu0 0.0
    %1798 = vmatprep.subr.mxu0 0.0
    %1799 = vmatpush1.msra.mxu0 0.0
    %1800 = vmatprep.subr.mxu0 0.0
    %1801 = vmatpush1.msra.mxu0 0.0
    %1802 = vmatprep.mubr.f32.mxu0 0.0
    %1803 = vmatmul.mubr.f32.gmra.mrb[0].mxu0 %v1716
    %v1804 = vpop.f32.mrb[0].mxu0
    %v1805 = vadd.f32 %v1737, %v1804
    %v1806 = vpop.f32.mrb[0].mxu0
    %1807 = vdwg.mxu0
    %v1808 = vtanh.pop %v1805
    %v1809 = vld [vmem:[%s2] sm:$0xff]
    %v1810 = vld [vmem:[%s2 + $0x8] sm:$0xff]
    %v1811 = vld [vmem:[%s2 + $0x10] sm:$0xff]
    %v1812 = vld [vmem:[%s2 + $0x18] sm:$0xff]
    %v1813 = vld [vmem:[%s2 + $0x20] sm:$0xff]
    %v1814 = vld [vmem:[%s2 + $0x28] sm:$0xff]
    %v1815 = vld [vmem:[%s2 + $0x30] sm:$0xff]
    %v1816 = vld [vmem:[%s2 + $0x38] sm:$0xff]
    %v1817 = vld [vmem:[%s2 + $0x40] sm:$0xff]
    %v1818 = vld [vmem:[%s2 + $0x48] sm:$0xff]
    %v1819 = vld [vmem:[%s2 + $0x50] sm:$0xff]
    %v1820 = vld [vmem:[%s2 + $0x58] sm:$0xff]
    %v1821 = vld [vmem:[%s2 + $0x60] sm:$0xff]
    %v1822 = vld [vmem:[%s2 + $0x68] sm:$0xff]
    %v1823 = vld [vmem:[%s2 + $0x70] sm:$0xff]
    %v1824 = vld [vmem:[%s2 + $0x78] sm:$0xff]
    %1825 = vmatprep.subr.mxu0 0.0
    %1826 = vmatpush1.msra.mxu0 %v1809
    %1827 = vmatprep.subr.mxu0 0.0
    %1828 = vmatpush1.msra.mxu0 %v1810
    %1829 = vmatprep.subr.mxu0 0.0
    %1830 = vmatpush1.msra.mxu0 %v1811
    %1831 = vmatprep.subr.mxu0 0.0
    %1832 = vmatpush1.msra.mxu0 %v1812
    %1833 = vmatprep.subr.mxu0 0.0
    %1834 = vmatpush1.msra.mxu0 %v1813
    %1835 = vmatprep.subr.mxu0 0.0
    %1836 = vmatpush1.msra.mxu0 %v1814
    %1837 = vmatprep.subr.mxu0 0.0
    %1838 = vmatpush1.msra.mxu0 %v1815
    %1839 = vmatprep.subr.mxu0 0.0
    %1840 = vmatpush1.msra.mxu0 %v1816
    %1841 = vmatprep.subr.mxu0 0.0
    %1842 = vmatpush1.msra.mxu0 %v1817
    %1843 = vmatprep.subr.mxu0 0.0
    %1844 = vmatpush1.msra.mxu0 %v1818
    %1845 = vmatprep.subr.mxu0 0.0
    %1846 = vmatpush1.msra.mxu0 %v1819
    %1847 = vmatprep.subr.mxu0 0.0
    %1848 = vmatpush1.msra.mxu0 %v1820
    %1849 = vmatprep.subr.mxu0 0.0
    %1850 = vmatpush1.msra.mxu0 %v1821
    %1851 = vmatprep.subr.mxu0 0.0
    %1852 = vmatpush1.msra.mxu0 %v1822
    %1853 = vmatprep.subr.mxu0 0.0
    %1854 = vmatpush1.msra.mxu0 %v1823
    %1855 = vmatprep.subr.mxu0 0.0
    %1856 = vmatpush1.msra.mxu0 %v1824
    %1857 = vmatprep.subr.mxu0 0.0
    %1858 = vmatpush1.msra.mxu0 0.0
    %1859 = vmatprep.subr.mxu0 0.0
    %1860 = vmatpush1.msra.mxu0 0.0
    %1861 = vmatprep.subr.mxu0 0.0
    %1862 = vmatpush1.msra.mxu0 0.0
    %1863 = vmatprep.subr.mxu0 0.0
    %1864 = vmatpush1.msra.mxu0 0.0
    %1865 = vmatprep.subr.mxu0 0.0
    %1866 = vmatpush1.msra.mxu0 0.0
    %1867 = vmatprep.subr.mxu0 0.0
    %1868 = vmatpush1.msra.mxu0 0.0
    %1869 = vmatprep.subr.mxu0 0.0
    %1870 = vmatpush1.msra.mxu0 0.0
    %1871 = vmatprep.subr.mxu0 0.0
    %1872 = vmatpush1.msra.mxu0 0.0
    %1873 = vmatprep.subr.mxu0 0.0
    %1874 = vmatpush1.msra.mxu0 0.0
    %1875 = vmatprep.subr.mxu0 0.0
    %1876 = vmatpush1.msra.mxu0 0.0
    %1877 = vmatprep.subr.mxu0 0.0
    %1878 = vmatpush1.msra.mxu0 0.0
    %1879 = vmatprep.subr.mxu0 0.0
    %1880 = vmatpush1.msra.mxu0 0.0
    %1881 = vmatprep.subr.mxu0 0.0
    %1882 = vmatpush1.msra.mxu0 0.0
    %1883 = vmatprep.subr.mxu0 0.0
    %1884 = vmatpush1.msra.mxu0 0.0
    %1885 = vmatprep.subr.mxu0 0.0
    %1886 = vmatpush1.msra.mxu0 0.0
    %1887 = vmatprep.subr.mxu0 0.0
    %1888 = vmatpush1.msra.mxu0 0.0
    %1889 = vmatprep.mubr.f32.mxu0 0.0
    %1890 = vmatmul.mubr.f32.gmra.mrb[0].mxu0 %v1808
    %v1891 = vpop.f32.mrb[0].mxu0
    %v1892 = vadd.f32 0.0, %v1891
    %v1893 = vpop.f32.mrb[0].mxu0
    %1894 = vdwg.mxu0
    %1895 = vst [vmem:[#allocation5] sm:$0x3] %v1892
    // Predicated region
    $region30: #{tpu_custom_call.1} parent=1 // pred_check
      _
    $region31: #{tpu_custom_call.1} parent=1 // pred_check_branch
      %1897 = sbr.rel (0) target = $region33
    $region32: #{tpu_custom_call.1} parent=1 // pred_region
      %s1899 = ssub.s32 32, 32
      %1900 = vsyncadd [#allocation4], %s1899
      %s1902 = sshll.u32 [#allocation5], 4
      %s1903 = int_to_ptr.vmem [resolvable:$true] %s1902
      %1905 = dma.vmem_to_hbm [thread:$0]  %s1903, 32, %s6, [#allocation4]
    $region33: #{tpu_custom_call.1} parent=1 // pred_fallthru
      _
    // Predicated region
    $region34: #{tpu_custom_call.1} parent=1 // pred_check
      _
    $region35: #{tpu_custom_call.1} parent=1 // pred_check_branch
      %1907 = sbr.rel (0) target = $region37
    $region36: #{tpu_custom_call.1} parent=1 // pred_region
      %1908 = dma.done [#allocation4], 32
    $region37: #{tpu_custom_call.1} parent=1 // pred_fallthru
      _
    %1909 = vsyncpa [#allocation3], 1
    %1910 = vsyncpa [#allocation4], 1

</llo_original>
